<compile_context>
chip_gen: v7x
topology: tpu7x:2x2x1
jax: 0.10.0
libtpu: 0.0.40
codegen_flags: <defaults>
</compile_context>

<pallas_src>
import jax
import jax.numpy as jnp
from jax.experimental import pallas as pl
from jax.experimental.pallas import tpu as pltpu

EPS = 1e-5   # PyTorch BatchNorm1d default eps


# ----------------------------------------------------------------------------
# Fused forward kernel
# ----------------------------------------------------------------------------
def _fused_forward_kernel(x_ref, w1_ref, s1_ref, t1_ref,
                          w2_ref, s2_ref, t2_ref,
                          fw1_ref, fb1_ref, fw2_ref, fb2_ref,
                          o_ref, xp_ref, hp_ref):
    """Whole ClassificationCNN forward in one kernel; intermediates in VMEM/vregs.

    Row convention for activations: row = position*B + batch.

    x_ref:   (L*B, 1)        input, (position, batch)-ordered
    w1_ref:  (K1, 1, C1)     conv1 taps (f32, VPU)
    s1,t1:   (1, C1)         folded BN1 scale / (conv_bias+BN) bias
    w2_ref:  (K2, C1, C2)    conv2 taps (MXU, possibly bf16)
    s2,t2:   (1, C2)         folded BN2 scale / bias
    fw1_ref: (L*C2, H)       fc1 weight, rows pre-permuted to (l, c) order
    fb1_ref: (1, H)
    fw2_ref: (H, NC)
    fb2_ref: (1, NC)
    o_ref:   (B, NC)         logits (NC=3 is a masked partial store; accepted, B tiny)
    xp_ref:  ((L+2*P1)*B, C1)  padded, lane-broadcast conv1 input scratch
    hp_ref:  ((L+2*P2)*B, C1)  padded conv2 input scratch
    """
    B, _ = o_ref.shape
    K1 = w1_ref.shape[0]
    C1 = w1_ref.shape[2]
    K2, _, C2 = w2_ref.shape
    L = fw1_ref.shape[0] // C2
    P1 = (K1 - 1) // 2
    P2 = (K2 - 1) // 2
    R = L * B                                  # valid rows, (position, batch) order
    f32 = jnp.float32

    # ---- stage conv1 input: zero ONLY the pad margins, broadcast interior once
    xp_ref[0:P1 * B, :] = jnp.zeros((P1 * B, C1), f32)
    xp_ref[(P1 + L) * B:(L + 2 * P1) * B, :] = jnp.zeros((P1 * B, C1), f32)
    # (R,1) -> (R,C1) lane broadcast hoisted out of the tap loop; one block store.
    xp_ref[P1 * B:(P1 + L) * B, :] = jnp.broadcast_to(x_ref[...], (R, C1))
    xp = xp_ref[...]                           # ((L+2*P1)*B, C1)

    # ---- layer1: Conv1d(1->32, k=5, p=2) + folded BN + ReLU  (VPU taps) ------
    acc1 = None
    for k in range(K1):                        # static unroll over 5 taps
        term = xp[k * B:(k + L) * B, :] * w1_ref[k]          # (R, C1)
        acc1 = term if acc1 is None else acc1 + term
    h1 = jnp.maximum(acc1 * s1_ref[...] + t1_ref[...], 0.0)  # (R, C1), f32

    # ---- stage conv2 input: margins zeroed, interior = ONE block store -------
    hp_ref[0:P2 * B, :] = jnp.zeros((P2 * B, C1), f32)
    hp_ref[(P2 + L) * B:(L + 2 * P2) * B, :] = jnp.zeros((P2 * B, C1), f32)
    hp_ref[P2 * B:(P2 + L) * B, :] = h1
    hp = hp_ref[...]                           # ((L+2*P2)*B, C1)

    # ---- layer2: Conv1d(32->64, k=3, p=1) + folded BN + ReLU  (MXU taps) -----
    acc2 = None
    for k in range(K2):                        # static unroll, one matmul per tap
        win = hp[k * B:(k + L) * B, :].astype(w2_ref.dtype)  # (R, C1)
        part = jnp.dot(win, w2_ref[k], preferred_element_type=f32)
        acc2 = part if acc2 is None else acc2 + part
    h2 = jnp.maximum(acc2 * s2_ref[...] + t2_ref[...], 0.0)  # (R, C2), rows (l, b)

    # ---- fc1: consume h2 block-wise; flatten is absorbed into the weight -----
    # y1[b,h] = sum_l  h2[l*B:(l+1)*B, :] @ fw1[l*C2:(l+1)*C2, :]
    # (fw1 rows are pre-permuted so this equals PyTorch's NCL flatten @ fc1_w.T).
    # No flattened slab is ever materialized: zero stores, pure MXU accumulation.
    # TODO(synk): for large L, make this a grid axis ("arbitrary") with a VMEM
    # f32 accumulator and a BlockSpec over fw1 instead of a static unroll.
    acc3 = None
    for l in range(L):
        lhs = h2[l * B:(l + 1) * B, :].astype(fw1_ref.dtype)      # (B, C2)
        rhs = fw1_ref[l * C2:(l + 1) * C2, :]                     # (C2, H)
        part = jnp.dot(lhs, rhs, preferred_element_type=f32)
        acc3 = part if acc3 is None else acc3 + part
    y1 = jnp.maximum(acc3 + fb1_ref[...], 0.0)                    # (B, H)

    # TODO(synk): nn.Dropout(0.3) train-mode RNG masking not implemented
    # (inference mode => identity), matching model.eval() semantics.

    # ---- fc2 ------------------------------------------------------------------
    out = jnp.dot(y1.astype(fw2_ref.dtype), fw2_ref[...],
                  preferred_element_type=f32) + fb2_ref[...]
    o_ref[...] = out.astype(o_ref.dtype)


# ----------------------------------------------------------------------------
# One-time parameter preparation (hoisted OUT of the per-call forward)
# ----------------------------------------------------------------------------
def prepare_params(p, param_dtype=jnp.float32):
    """Layout transposes, eval-mode BN folding (conv bias included), the fc1 row
    permutation that absorbs PyTorch's NCL flatten order, and optional bf16 cast
    of the MXU weights (accumulation / epilogues stay f32 in the kernel)."""
    s1 = p["bn1_gamma"] / jnp.sqrt(p["bn1_var"] + EPS)
    t1 = (p["conv1_b"] - p["bn1_mean"]) * s1 + p["bn1_beta"]
    s2 = p["bn2_gamma"] / jnp.sqrt(p["bn2_var"] + EPS)
    t2 = (p["conv2_b"] - p["bn2_mean"]) * s2 + p["bn2_beta"]

    C2 = p["conv2_w"].shape[0]                   # 64
    H, F = p["fc1_w"].shape                      # (64, 64*L)
    L = F // C2
    # fw1[l*C2 + c, h] = fc1_w[h, c*L + l]  (matches the (l, c)-blocked consumption)
    fw1 = p["fc1_w"].reshape(H, C2, L).transpose(2, 1, 0).reshape(L * C2, H)

    return dict(
        w1=jnp.transpose(p["conv1_w"], (2, 1, 0)),              # (K1, 1, C1), f32 (VPU)
        s1=s1[None, :], t1=t1[None, :],
        w2=jnp.transpose(p["conv2_w"], (2, 1, 0)).astype(param_dtype),  # (K2, C1, C2)
        s2=s2[None, :], t2=t2[None, :],
        fw1=fw1.astype(param_dtype),                            # (L*C2, H)
        fb1=p["fc1_b"][None, :],
        fw2=p["fc2_w"].T.astype(param_dtype),                   # (H, NC)
        fb2=p["fc2_b"][None, :],
    )


# ----------------------------------------------------------------------------
# Forward: one gridless pallas_call (everything fits VMEM at these sizes)
# ----------------------------------------------------------------------------
@jax.jit
def classification_cnn_forward(x, prep):
    B, L = x.shape
    C1 = prep["s1"].shape[1]
    C2 = prep["s2"].shape[1]
    H = prep["fb1"].shape[1]
    NC = prep["fb2"].shape[1]
    K1 = prep["w1"].shape[0]
    K2 = prep["w2"].shape[0]
    P1 = (K1 - 1) // 2
    P2 = (K2 - 1) // 2

    # Rows ordered (position, batch): row = l*B + b. Done by XLA outside the
    # kernel on the tiny raw input; makes every padded interior contiguous.
    xt = x.T.reshape(L * B, 1)

    vmem = pl.BlockSpec(memory_space=pltpu.MemorySpace.VMEM)

    inputs = (xt, prep["w1"], prep["s1"], prep["t1"],
              prep["w2"], prep["s2"], prep["t2"],
              prep["fw1"], prep["fb1"], prep["fw2"], prep["fb2"])

    flops = (2 * K1 * C1 + 2 * K2 * C1 * C2 + 2 * C2 * H) * L * B + 2 * H * NC * B
    bytes_accessed = sum(int(a.size) * a.dtype.itemsize for a in inputs) + B * NC * 4

    return pl.pallas_call(
        _fused_forward_kernel,
        out_shape=jax.ShapeDtypeStruct((B, NC), jnp.float32),
        in_specs=[vmem] * len(inputs),
        out_specs=vmem,
        scratch_shapes=[
            pltpu.VMEM(((L + 2 * P1) * B, C1), jnp.float32),   # padded conv1 input
            pltpu.VMEM(((L + 2 * P2) * B, C1), jnp.float32),   # padded conv2 input
        ],
        cost_estimate=pl.CostEstimate(flops=flops, transcendentals=0,
                                      bytes_accessed=bytes_accessed),
    )(*inputs)


# ----------------------------------------------------------------------------
# Parameters (deterministic, shapes match the nn.Module __init__)
# ----------------------------------------------------------------------------
def init_params(key, input_length, num_classes=3):
    ks = jax.random.split(key, 16)
    u = lambda k, shape, s=0.2: jax.random.uniform(k, shape, jnp.float32, -s, s)
    return dict(
        conv1_w=u(ks[0], (32, 1, 5)),
        conv1_b=u(ks[1], (32,)),
        bn1_gamma=1.0 + u(ks[2], (32,), 0.1),
        bn1_beta=u(ks[3], (32,), 0.1),
        bn1_mean=u(ks[4], (32,), 0.1),
        bn1_var=0.5 + jax.random.uniform(ks[5], (32,), jnp.float32),
        conv2_w=u(ks[6], (64, 32, 3)),
        conv2_b=u(ks[7], (64,)),
        bn2_gamma=1.0 + u(ks[8], (64,), 0.1),
        bn2_beta=u(ks[9], (64,), 0.1),
        bn2_mean=u(ks[10], (64,), 0.1),
        bn2_var=0.5 + jax.random.uniform(ks[11], (64,), jnp.float32),
        fc1_w=u(ks[12], (64, 64 * input_length), 0.05),
        fc1_b=u(ks[13], (64,)),
        fc2_w=u(ks[14], (num_classes, 64)),
        fc2_b=u(ks[15], (64,) if False else (num_classes,)),
    )


# ----------------------------------------------------------------------------
# Pure-JAX reference (correctness check only)
# ----------------------------------------------------------------------------
def ref_forward(x, p):
    B, L = x.shape
    xin = x[:, None, :]                                    # (B, 1, L), NCL

    def conv(xn, w, b, pad):
        y = jax.lax.conv_general_dilated(
            xn, w, window_strides=(1,), padding=[(pad, pad)],
            dimension_numbers=("NCH", "OIH", "NCH"))
        return y + b[None, :, None]

    def bn(y, g, bt, m, v):
        return ((y - m[None, :, None]) / jnp.sqrt(v[None, :, None] + EPS)
                * g[None, :, None] + bt[None, :, None])

    h = jax.nn.relu(bn(conv(xin, p["conv1_w"], p["conv1_b"], 2),
                       p["bn1_gamma"], p["bn1_beta"], p["bn1_mean"], p["bn1_var"]))
    h = jax.nn.relu(bn(conv(h, p["conv2_w"], p["conv2_b"], 1),
                       p["bn2_gamma"], p["bn2_beta"], p["bn2_mean"], p["bn2_var"]))
    flat = h.reshape(B, -1)
    h = jax.nn.relu(flat @ p["fc1_w"].T + p["fc1_b"])
    return h @ p["fc2_w"].T + p["fc2_b"]


if __name__ == "__main__":
    key = jax.random.PRNGKey(0)
    k_x, k_p = jax.random.split(key)
    B, L, NUM_CLASSES = 2, 16, 3
    x = jax.random.normal(k_x, (B, L), jnp.float32)
    raw = init_params(k_p, input_length=L, num_classes=NUM_CLASSES)
    ref = ref_forward(x, raw)

    # f32 weights: bit-tight check against the pure-JAX reference.
    prep32 = prepare_params(raw, param_dtype=jnp.float32)
    out32 = jax.block_until_ready(classification_cnn_forward(x, prep32))
    assert out32.shape == (B, NUM_CLASSES), out32.shape
    assert jnp.allclose(out32, ref, atol=1e-4, rtol=1e-4), (out32, ref)

    # bf16 MXU weights (conv2 / fc1 / fc2), f32 accumulation + f32 epilogues.
    prep16 = prepare_params(raw, param_dtype=jnp.bfloat16)
    out16 = jax.block_until_ready(classification_cnn_forward(x, prep16))
    assert out16.shape == (B, NUM_CLASSES), out16.shape
    assert jnp.allclose(out16, ref, atol=2e-2, rtol=2e-2), (out16, ref)

    print("KERNEL_OK")
</pallas_src>

<mosaic_0001>
module attributes {stable_mosaic.version = 11 : i64} {
  func.func @_fused_forward_kernel(%arg0: memref<32x1xf32, #tpu.memory_space<vmem>>, %arg1: memref<5x1x32xf32, #tpu.memory_space<vmem>>, %arg2: memref<1x32xf32, #tpu.memory_space<vmem>>, %arg3: memref<1x32xf32, #tpu.memory_space<vmem>>, %arg4: memref<3x32x64xf32, #tpu.memory_space<vmem>>, %arg5: memref<1x64xf32, #tpu.memory_space<vmem>>, %arg6: memref<1x64xf32, #tpu.memory_space<vmem>>, %arg7: memref<1024x64xf32, #tpu.memory_space<vmem>>, %arg8: memref<1x64xf32, #tpu.memory_space<vmem>>, %arg9: memref<64x3xf32, #tpu.memory_space<vmem>>, %arg10: memref<1x3xf32, #tpu.memory_space<vmem>>, %arg11: memref<2x3xf32, #tpu.memory_space<vmem>>, %arg12: memref<40x32xf32, #tpu.memory_space<vmem>>, %arg13: memref<36x32xf32, #tpu.memory_space<vmem>>) attributes {dimension_semantics = [], scalar_prefetch = 0 : i64, scratch_operands = 2 : i64, tpu.core_type = #tpu.core_type<tc>} {
    %cst = arith.constant 0.000000e+00 : f32
    %0 = vector.broadcast %cst : f32 to vector<4x32xf32>
    %c0 = arith.constant 0 : index
    %c0_0 = arith.constant 0 : index
    %1 = vector.load %arg12[%c0, %c0_0] : memref<40x32xf32, #tpu.memory_space<vmem>>, vector<4x32xf32>
    tpu.vector_store %arg12[%c0, %c0_0], %0 {strides = array<i32>} : memref<40x32xf32, #tpu.memory_space<vmem>>, vector<4x32xf32>,
    %cst_1 = arith.constant 0.000000e+00 : f32
    %2 = vector.broadcast %cst_1 : f32 to vector<4x32xf32>
    %c36 = arith.constant 36 : index
    %c0_2 = arith.constant 0 : index
    %3 = vector.load %arg12[%c36, %c0_2] : memref<40x32xf32, #tpu.memory_space<vmem>>, vector<4x32xf32>
    tpu.vector_store %arg12[%c36, %c0_2], %2 {strides = array<i32>} : memref<40x32xf32, #tpu.memory_space<vmem>>, vector<4x32xf32>,
    %c0_3 = arith.constant 0 : index
    %c0_4 = arith.constant 0 : index
    %4 = vector.load %arg0[%c0_3, %c0_4] : memref<32x1xf32, #tpu.memory_space<vmem>>, vector<32x1xf32>
    %5 = vector.shape_cast %4 : vector<32x1xf32> to vector<32x1xf32>
    %6 = vector.broadcast %5 : vector<32x1xf32> to vector<32x32xf32>
    %c4 = arith.constant 4 : index
    %c0_5 = arith.constant 0 : index
    %7 = vector.load %arg12[%c4, %c0_5] : memref<40x32xf32, #tpu.memory_space<vmem>>, vector<32x32xf32>
    tpu.vector_store %arg12[%c4, %c0_5], %6 {strides = array<i32>} : memref<40x32xf32, #tpu.memory_space<vmem>>, vector<32x32xf32>,
    %c0_6 = arith.constant 0 : index
    %c0_7 = arith.constant 0 : index
    %8 = vector.load %arg12[%c0_6, %c0_7] : memref<40x32xf32, #tpu.memory_space<vmem>>, vector<40x32xf32>
    %9 = vector.extract_strided_slice %8 {offsets = [0, 0], sizes = [32, 32], strides = [1, 1]} : vector<40x32xf32> to vector<32x32xf32>
    %c0_8 = arith.constant 0 : index
    %c0_9 = arith.constant 0 : index
    %c0_10 = arith.constant 0 : index
    %10 = vector.load %arg1[%c0_8, %c0_9, %c0_10] : memref<5x1x32xf32, #tpu.memory_space<vmem>>, vector<1x1x32xf32>
    %11 = vector.shape_cast %10 : vector<1x1x32xf32> to vector<1x32xf32>
    %12 = vector.broadcast %11 : vector<1x32xf32> to vector<32x32xf32>
    %13 = arith.mulf %9, %12 : vector<32x32xf32>
    %14 = vector.extract_strided_slice %8 {offsets = [2, 0], sizes = [32, 32], strides = [1, 1]} : vector<40x32xf32> to vector<32x32xf32>
    %c1 = arith.constant 1 : index
    %c0_11 = arith.constant 0 : index
    %c0_12 = arith.constant 0 : index
    %15 = vector.load %arg1[%c1, %c0_11, %c0_12] : memref<5x1x32xf32, #tpu.memory_space<vmem>>, vector<1x1x32xf32>
    %16 = vector.shape_cast %15 : vector<1x1x32xf32> to vector<1x32xf32>
    %17 = vector.broadcast %16 : vector<1x32xf32> to vector<32x32xf32>
    %18 = arith.mulf %14, %17 : vector<32x32xf32>
    %19 = arith.addf %13, %18 : vector<32x32xf32>
    %20 = vector.extract_strided_slice %8 {offsets = [4, 0], sizes = [32, 32], strides = [1, 1]} : vector<40x32xf32> to vector<32x32xf32>
    %c2 = arith.constant 2 : index
    %c0_13 = arith.constant 0 : index
    %c0_14 = arith.constant 0 : index
    %21 = vector.load %arg1[%c2, %c0_13, %c0_14] : memref<5x1x32xf32, #tpu.memory_space<vmem>>, vector<1x1x32xf32>
    %22 = vector.shape_cast %21 : vector<1x1x32xf32> to vector<1x32xf32>
    %23 = vector.broadcast %22 : vector<1x32xf32> to vector<32x32xf32>
    %24 = arith.mulf %20, %23 : vector<32x32xf32>
    %25 = arith.addf %19, %24 : vector<32x32xf32>
    %26 = vector.extract_strided_slice %8 {offsets = [6, 0], sizes = [32, 32], strides = [1, 1]} : vector<40x32xf32> to vector<32x32xf32>
    %c3 = arith.constant 3 : index
    %c0_15 = arith.constant 0 : index
    %c0_16 = arith.constant 0 : index
    %27 = vector.load %arg1[%c3, %c0_15, %c0_16] : memref<5x1x32xf32, #tpu.memory_space<vmem>>, vector<1x1x32xf32>
    %28 = vector.shape_cast %27 : vector<1x1x32xf32> to vector<1x32xf32>
    %29 = vector.broadcast %28 : vector<1x32xf32> to vector<32x32xf32>
    %30 = arith.mulf %26, %29 : vector<32x32xf32>
    %31 = arith.addf %25, %30 : vector<32x32xf32>
    %32 = vector.extract_strided_slice %8 {offsets = [8, 0], sizes = [32, 32], strides = [1, 1]} : vector<40x32xf32> to vector<32x32xf32>
    %c4_17 = arith.constant 4 : index
    %c0_18 = arith.constant 0 : index
    %c0_19 = arith.constant 0 : index
    %33 = vector.load %arg1[%c4_17, %c0_18, %c0_19] : memref<5x1x32xf32, #tpu.memory_space<vmem>>, vector<1x1x32xf32>
    %34 = vector.shape_cast %33 : vector<1x1x32xf32> to vector<1x32xf32>
    %35 = vector.broadcast %34 : vector<1x32xf32> to vector<32x32xf32>
    %36 = arith.mulf %32, %35 : vector<32x32xf32>
    %37 = arith.addf %31, %36 : vector<32x32xf32>
    %c0_20 = arith.constant 0 : index
    %c0_21 = arith.constant 0 : index
    %38 = vector.load %arg2[%c0_20, %c0_21] : memref<1x32xf32, #tpu.memory_space<vmem>>, vector<1x32xf32>
    %39 = vector.broadcast %38 : vector<1x32xf32> to vector<32x32xf32>
    %40 = arith.mulf %37, %39 : vector<32x32xf32>
    %c0_22 = arith.constant 0 : index
    %c0_23 = arith.constant 0 : index
    %41 = vector.load %arg3[%c0_22, %c0_23] : memref<1x32xf32, #tpu.memory_space<vmem>>, vector<1x32xf32>
    %42 = vector.broadcast %41 : vector<1x32xf32> to vector<32x32xf32>
    %43 = arith.addf %40, %42 : vector<32x32xf32>
    %cst_24 = arith.constant 0.000000e+00 : f32
    %44 = vector.broadcast %cst_24 : f32 to vector<32x32xf32>
    %45 = arith.maximumf %43, %44 : vector<32x32xf32>
    %cst_25 = arith.constant 0.000000e+00 : f32
    %46 = vector.broadcast %cst_25 : f32 to vector<2x32xf32>
    %c0_26 = arith.constant 0 : index
    %c0_27 = arith.constant 0 : index
    %47 = vector.load %arg13[%c0_26, %c0_27] : memref<36x32xf32, #tpu.memory_space<vmem>>, vector<2x32xf32>
    tpu.vector_store %arg13[%c0_26, %c0_27], %46 {strides = array<i32>} : memref<36x32xf32, #tpu.memory_space<vmem>>, vector<2x32xf32>,
    %cst_28 = arith.constant 0.000000e+00 : f32
    %48 = vector.broadcast %cst_28 : f32 to vector<2x32xf32>
    %c34 = arith.constant 34 : index
    %c0_29 = arith.constant 0 : index
    %49 = vector.load %arg13[%c34, %c0_29] : memref<36x32xf32, #tpu.memory_space<vmem>>, vector<2x32xf32>
    tpu.vector_store %arg13[%c34, %c0_29], %48 {strides = array<i32>} : memref<36x32xf32, #tpu.memory_space<vmem>>, vector<2x32xf32>,
    %c2_30 = arith.constant 2 : index
    %c0_31 = arith.constant 0 : index
    %50 = vector.load %arg13[%c2_30, %c0_31] : memref<36x32xf32, #tpu.memory_space<vmem>>, vector<32x32xf32>
    tpu.vector_store %arg13[%c2_30, %c0_31], %45 {strides = array<i32>} : memref<36x32xf32, #tpu.memory_space<vmem>>, vector<32x32xf32>,
    %c0_32 = arith.constant 0 : index
    %c0_33 = arith.constant 0 : index
    %51 = vector.load %arg13[%c0_32, %c0_33] : memref<36x32xf32, #tpu.memory_space<vmem>>, vector<36x32xf32>
    %52 = vector.extract_strided_slice %51 {offsets = [0, 0], sizes = [32, 32], strides = [1, 1]} : vector<36x32xf32> to vector<32x32xf32>
    %c0_34 = arith.constant 0 : index
    %c0_35 = arith.constant 0 : index
    %c0_36 = arith.constant 0 : index
    %53 = vector.load %arg4[%c0_34, %c0_35, %c0_36] : memref<3x32x64xf32, #tpu.memory_space<vmem>>, vector<1x32x64xf32>
    %54 = vector.shape_cast %53 : vector<1x32x64xf32> to vector<32x64xf32>
    %cst_37 = arith.constant dense<0.000000e+00> : vector<32x64xf32>
    %55 = tpu.matmul %52, %54, %cst_37 {dimension_numbers = #tpu.dot_dimension_numbers<[1], [0], [0], [1], [0, 0, 1, 1], [], []>} : vector<32x32xf32>, vector<32x64xf32>, vector<32x64xf32> -> vector<32x64xf32>
    %56 = vector.extract_strided_slice %51 {offsets = [2, 0], sizes = [32, 32], strides = [1, 1]} : vector<36x32xf32> to vector<32x32xf32>
    %c1_38 = arith.constant 1 : index
    %c0_39 = arith.constant 0 : index
    %c0_40 = arith.constant 0 : index
    %57 = vector.load %arg4[%c1_38, %c0_39, %c0_40] : memref<3x32x64xf32, #tpu.memory_space<vmem>>, vector<1x32x64xf32>
    %58 = vector.shape_cast %57 : vector<1x32x64xf32> to vector<32x64xf32>
    %cst_41 = arith.constant dense<0.000000e+00> : vector<32x64xf32>
    %59 = tpu.matmul %56, %58, %cst_41 {dimension_numbers = #tpu.dot_dimension_numbers<[1], [0], [0], [1], [0, 0, 1, 1], [], []>} : vector<32x32xf32>, vector<32x64xf32>, vector<32x64xf32> -> vector<32x64xf32>
    %60 = arith.addf %55, %59 : vector<32x64xf32>
    %61 = vector.extract_strided_slice %51 {offsets = [4, 0], sizes = [32, 32], strides = [1, 1]} : vector<36x32xf32> to vector<32x32xf32>
    %c2_42 = arith.constant 2 : index
    %c0_43 = arith.constant 0 : index
    %c0_44 = arith.constant 0 : index
    %62 = vector.load %arg4[%c2_42, %c0_43, %c0_44] : memref<3x32x64xf32, #tpu.memory_space<vmem>>, vector<1x32x64xf32>
    %63 = vector.shape_cast %62 : vector<1x32x64xf32> to vector<32x64xf32>
    %cst_45 = arith.constant dense<0.000000e+00> : vector<32x64xf32>
    %64 = tpu.matmul %61, %63, %cst_45 {dimension_numbers = #tpu.dot_dimension_numbers<[1], [0], [0], [1], [0, 0, 1, 1], [], []>} : vector<32x32xf32>, vector<32x64xf32>, vector<32x64xf32> -> vector<32x64xf32>
    %65 = arith.addf %60, %64 : vector<32x64xf32>
    %c0_46 = arith.constant 0 : index
    %c0_47 = arith.constant 0 : index
    %66 = vector.load %arg5[%c0_46, %c0_47] : memref<1x64xf32, #tpu.memory_space<vmem>>, vector<1x64xf32>
    %67 = vector.broadcast %66 : vector<1x64xf32> to vector<32x64xf32>
    %68 = arith.mulf %65, %67 : vector<32x64xf32>
    %c0_48 = arith.constant 0 : index
    %c0_49 = arith.constant 0 : index
    %69 = vector.load %arg6[%c0_48, %c0_49] : memref<1x64xf32, #tpu.memory_space<vmem>>, vector<1x64xf32>
    %70 = vector.broadcast %69 : vector<1x64xf32> to vector<32x64xf32>
    %71 = arith.addf %68, %70 : vector<32x64xf32>
    %cst_50 = arith.constant 0.000000e+00 : f32
    %72 = vector.broadcast %cst_50 : f32 to vector<32x64xf32>
    %73 = arith.maximumf %71, %72 : vector<32x64xf32>
    %74 = vector.extract_strided_slice %73 {offsets = [0, 0], sizes = [2, 64], strides = [1, 1]} : vector<32x64xf32> to vector<2x64xf32>
    %c0_51 = arith.constant 0 : index
    %c0_52 = arith.constant 0 : index
    %75 = vector.load %arg7[%c0_51, %c0_52] : memref<1024x64xf32, #tpu.memory_space<vmem>>, vector<64x64xf32>
    %cst_53 = arith.constant dense<0.000000e+00> : vector<2x64xf32>
    %76 = tpu.matmul %74, %75, %cst_53 {dimension_numbers = #tpu.dot_dimension_numbers<[1], [0], [0], [1], [0, 0, 1, 1], [], []>} : vector<2x64xf32>, vector<64x64xf32>, vector<2x64xf32> -> vector<2x64xf32>
    %77 = vector.extract_strided_slice %73 {offsets = [2, 0], sizes = [2, 64], strides = [1, 1]} : vector<32x64xf32> to vector<2x64xf32>
    %c64 = arith.constant 64 : index
    %c0_54 = arith.constant 0 : index
    %78 = vector.load %arg7[%c64, %c0_54] : memref<1024x64xf32, #tpu.memory_space<vmem>>, vector<64x64xf32>
    %cst_55 = arith.constant dense<0.000000e+00> : vector<2x64xf32>
    %79 = tpu.matmul %77, %78, %cst_55 {dimension_numbers = #tpu.dot_dimension_numbers<[1], [0], [0], [1], [0, 0, 1, 1], [], []>} : vector<2x64xf32>, vector<64x64xf32>, vector<2x64xf32> -> vector<2x64xf32>
    %80 = arith.addf %76, %79 : vector<2x64xf32>
    %81 = vector.extract_strided_slice %73 {offsets = [4, 0], sizes = [2, 64], strides = [1, 1]} : vector<32x64xf32> to vector<2x64xf32>
    %c128 = arith.constant 128 : index
    %c0_56 = arith.constant 0 : index
    %82 = vector.load %arg7[%c128, %c0_56] : memref<1024x64xf32, #tpu.memory_space<vmem>>, vector<64x64xf32>
    %cst_57 = arith.constant dense<0.000000e+00> : vector<2x64xf32>
    %83 = tpu.matmul %81, %82, %cst_57 {dimension_numbers = #tpu.dot_dimension_numbers<[1], [0], [0], [1], [0, 0, 1, 1], [], []>} : vector<2x64xf32>, vector<64x64xf32>, vector<2x64xf32> -> vector<2x64xf32>
    %84 = arith.addf %80, %83 : vector<2x64xf32>
    %85 = vector.extract_strided_slice %73 {offsets = [6, 0], sizes = [2, 64], strides = [1, 1]} : vector<32x64xf32> to vector<2x64xf32>
    %c192 = arith.constant 192 : index
    %c0_58 = arith.constant 0 : index
    %86 = vector.load %arg7[%c192, %c0_58] : memref<1024x64xf32, #tpu.memory_space<vmem>>, vector<64x64xf32>
    %cst_59 = arith.constant dense<0.000000e+00> : vector<2x64xf32>
    %87 = tpu.matmul %85, %86, %cst_59 {dimension_numbers = #tpu.dot_dimension_numbers<[1], [0], [0], [1], [0, 0, 1, 1], [], []>} : vector<2x64xf32>, vector<64x64xf32>, vector<2x64xf32> -> vector<2x64xf32>
    %88 = arith.addf %84, %87 : vector<2x64xf32>
    %89 = vector.extract_strided_slice %73 {offsets = [8, 0], sizes = [2, 64], strides = [1, 1]} : vector<32x64xf32> to vector<2x64xf32>
    %c256 = arith.constant 256 : index
    %c0_60 = arith.constant 0 : index
    %90 = vector.load %arg7[%c256, %c0_60] : memref<1024x64xf32, #tpu.memory_space<vmem>>, vector<64x64xf32>
    %cst_61 = arith.constant dense<0.000000e+00> : vector<2x64xf32>
    %91 = tpu.matmul %89, %90, %cst_61 {dimension_numbers = #tpu.dot_dimension_numbers<[1], [0], [0], [1], [0, 0, 1, 1], [], []>} : vector<2x64xf32>, vector<64x64xf32>, vector<2x64xf32> -> vector<2x64xf32>
    %92 = arith.addf %88, %91 : vector<2x64xf32>
    %93 = vector.extract_strided_slice %73 {offsets = [10, 0], sizes = [2, 64], strides = [1, 1]} : vector<32x64xf32> to vector<2x64xf32>
    %c320 = arith.constant 320 : index
    %c0_62 = arith.constant 0 : index
    %94 = vector.load %arg7[%c320, %c0_62] : memref<1024x64xf32, #tpu.memory_space<vmem>>, vector<64x64xf32>
    %cst_63 = arith.constant dense<0.000000e+00> : vector<2x64xf32>
    %95 = tpu.matmul %93, %94, %cst_63 {dimension_numbers = #tpu.dot_dimension_numbers<[1], [0], [0], [1], [0, 0, 1, 1], [], []>} : vector<2x64xf32>, vector<64x64xf32>, vector<2x64xf32> -> vector<2x64xf32>
    %96 = arith.addf %92, %95 : vector<2x64xf32>
    %97 = vector.extract_strided_slice %73 {offsets = [12, 0], sizes = [2, 64], strides = [1, 1]} : vector<32x64xf32> to vector<2x64xf32>
    %c384 = arith.constant 384 : index
    %c0_64 = arith.constant 0 : index
    %98 = vector.load %arg7[%c384, %c0_64] : memref<1024x64xf32, #tpu.memory_space<vmem>>, vector<64x64xf32>
    %cst_65 = arith.constant dense<0.000000e+00> : vector<2x64xf32>
    %99 = tpu.matmul %97, %98, %cst_65 {dimension_numbers = #tpu.dot_dimension_numbers<[1], [0], [0], [1], [0, 0, 1, 1], [], []>} : vector<2x64xf32>, vector<64x64xf32>, vector<2x64xf32> -> vector<2x64xf32>
    %100 = arith.addf %96, %99 : vector<2x64xf32>
    %101 = vector.extract_strided_slice %73 {offsets = [14, 0], sizes = [2, 64], strides = [1, 1]} : vector<32x64xf32> to vector<2x64xf32>
    %c448 = arith.constant 448 : index
    %c0_66 = arith.constant 0 : index
    %102 = vector.load %arg7[%c448, %c0_66] : memref<1024x64xf32, #tpu.memory_space<vmem>>, vector<64x64xf32>
    %cst_67 = arith.constant dense<0.000000e+00> : vector<2x64xf32>
    %103 = tpu.matmul %101, %102, %cst_67 {dimension_numbers = #tpu.dot_dimension_numbers<[1], [0], [0], [1], [0, 0, 1, 1], [], []>} : vector<2x64xf32>, vector<64x64xf32>, vector<2x64xf32> -> vector<2x64xf32>
    %104 = arith.addf %100, %103 : vector<2x64xf32>
    %105 = vector.extract_strided_slice %73 {offsets = [16, 0], sizes = [2, 64], strides = [1, 1]} : vector<32x64xf32> to vector<2x64xf32>
    %c512 = arith.constant 512 : index
    %c0_68 = arith.constant 0 : index
    %106 = vector.load %arg7[%c512, %c0_68] : memref<1024x64xf32, #tpu.memory_space<vmem>>, vector<64x64xf32>
    %cst_69 = arith.constant dense<0.000000e+00> : vector<2x64xf32>
    %107 = tpu.matmul %105, %106, %cst_69 {dimension_numbers = #tpu.dot_dimension_numbers<[1], [0], [0], [1], [0, 0, 1, 1], [], []>} : vector<2x64xf32>, vector<64x64xf32>, vector<2x64xf32> -> vector<2x64xf32>
    %108 = arith.addf %104, %107 : vector<2x64xf32>
    %109 = vector.extract_strided_slice %73 {offsets = [18, 0], sizes = [2, 64], strides = [1, 1]} : vector<32x64xf32> to vector<2x64xf32>
    %c576 = arith.constant 576 : index
    %c0_70 = arith.constant 0 : index
    %110 = vector.load %arg7[%c576, %c0_70] : memref<1024x64xf32, #tpu.memory_space<vmem>>, vector<64x64xf32>
    %cst_71 = arith.constant dense<0.000000e+00> : vector<2x64xf32>
    %111 = tpu.matmul %109, %110, %cst_71 {dimension_numbers = #tpu.dot_dimension_numbers<[1], [0], [0], [1], [0, 0, 1, 1], [], []>} : vector<2x64xf32>, vector<64x64xf32>, vector<2x64xf32> -> vector<2x64xf32>
    %112 = arith.addf %108, %111 : vector<2x64xf32>
    %113 = vector.extract_strided_slice %73 {offsets = [20, 0], sizes = [2, 64], strides = [1, 1]} : vector<32x64xf32> to vector<2x64xf32>
    %c640 = arith.constant 640 : index
    %c0_72 = arith.constant 0 : index
    %114 = vector.load %arg7[%c640, %c0_72] : memref<1024x64xf32, #tpu.memory_space<vmem>>, vector<64x64xf32>
    %cst_73 = arith.constant dense<0.000000e+00> : vector<2x64xf32>
    %115 = tpu.matmul %113, %114, %cst_73 {dimension_numbers = #tpu.dot_dimension_numbers<[1], [0], [0], [1], [0, 0, 1, 1], [], []>} : vector<2x64xf32>, vector<64x64xf32>, vector<2x64xf32> -> vector<2x64xf32>
    %116 = arith.addf %112, %115 : vector<2x64xf32>
    %117 = vector.extract_strided_slice %73 {offsets = [22, 0], sizes = [2, 64], strides = [1, 1]} : vector<32x64xf32> to vector<2x64xf32>
    %c704 = arith.constant 704 : index
    %c0_74 = arith.constant 0 : index
    %118 = vector.load %arg7[%c704, %c0_74] : memref<1024x64xf32, #tpu.memory_space<vmem>>, vector<64x64xf32>
    %cst_75 = arith.constant dense<0.000000e+00> : vector<2x64xf32>
    %119 = tpu.matmul %117, %118, %cst_75 {dimension_numbers = #tpu.dot_dimension_numbers<[1], [0], [0], [1], [0, 0, 1, 1], [], []>} : vector<2x64xf32>, vector<64x64xf32>, vector<2x64xf32> -> vector<2x64xf32>
    %120 = arith.addf %116, %119 : vector<2x64xf32>
    %121 = vector.extract_strided_slice %73 {offsets = [24, 0], sizes = [2, 64], strides = [1, 1]} : vector<32x64xf32> to vector<2x64xf32>
    %c768 = arith.constant 768 : index
    %c0_76 = arith.constant 0 : index
    %122 = vector.load %arg7[%c768, %c0_76] : memref<1024x64xf32, #tpu.memory_space<vmem>>, vector<64x64xf32>
    %cst_77 = arith.constant dense<0.000000e+00> : vector<2x64xf32>
    %123 = tpu.matmul %121, %122, %cst_77 {dimension_numbers = #tpu.dot_dimension_numbers<[1], [0], [0], [1], [0, 0, 1, 1], [], []>} : vector<2x64xf32>, vector<64x64xf32>, vector<2x64xf32> -> vector<2x64xf32>
    %124 = arith.addf %120, %123 : vector<2x64xf32>
    %125 = vector.extract_strided_slice %73 {offsets = [26, 0], sizes = [2, 64], strides = [1, 1]} : vector<32x64xf32> to vector<2x64xf32>
    %c832 = arith.constant 832 : index
    %c0_78 = arith.constant 0 : index
    %126 = vector.load %arg7[%c832, %c0_78] : memref<1024x64xf32, #tpu.memory_space<vmem>>, vector<64x64xf32>
    %cst_79 = arith.constant dense<0.000000e+00> : vector<2x64xf32>
    %127 = tpu.matmul %125, %126, %cst_79 {dimension_numbers = #tpu.dot_dimension_numbers<[1], [0], [0], [1], [0, 0, 1, 1], [], []>} : vector<2x64xf32>, vector<64x64xf32>, vector<2x64xf32> -> vector<2x64xf32>
    %128 = arith.addf %124, %127 : vector<2x64xf32>
    %129 = vector.extract_strided_slice %73 {offsets = [28, 0], sizes = [2, 64], strides = [1, 1]} : vector<32x64xf32> to vector<2x64xf32>
    %c896 = arith.constant 896 : index
    %c0_80 = arith.constant 0 : index
    %130 = vector.load %arg7[%c896, %c0_80] : memref<1024x64xf32, #tpu.memory_space<vmem>>, vector<64x64xf32>
    %cst_81 = arith.constant dense<0.000000e+00> : vector<2x64xf32>
    %131 = tpu.matmul %129, %130, %cst_81 {dimension_numbers = #tpu.dot_dimension_numbers<[1], [0], [0], [1], [0, 0, 1, 1], [], []>} : vector<2x64xf32>, vector<64x64xf32>, vector<2x64xf32> -> vector<2x64xf32>
    %132 = arith.addf %128, %131 : vector<2x64xf32>
    %133 = vector.extract_strided_slice %73 {offsets = [30, 0], sizes = [2, 64], strides = [1, 1]} : vector<32x64xf32> to vector<2x64xf32>
    %c960 = arith.constant 960 : index
    %c0_82 = arith.constant 0 : index
    %134 = vector.load %arg7[%c960, %c0_82] : memref<1024x64xf32, #tpu.memory_space<vmem>>, vector<64x64xf32>
    %cst_83 = arith.constant dense<0.000000e+00> : vector<2x64xf32>
    %135 = tpu.matmul %133, %134, %cst_83 {dimension_numbers = #tpu.dot_dimension_numbers<[1], [0], [0], [1], [0, 0, 1, 1], [], []>} : vector<2x64xf32>, vector<64x64xf32>, vector<2x64xf32> -> vector<2x64xf32>
    %136 = arith.addf %132, %135 : vector<2x64xf32>
    %c0_84 = arith.constant 0 : index
    %c0_85 = arith.constant 0 : index
    %137 = vector.load %arg8[%c0_84, %c0_85] : memref<1x64xf32, #tpu.memory_space<vmem>>, vector<1x64xf32>
    %138 = vector.broadcast %137 : vector<1x64xf32> to vector<2x64xf32>
    %139 = arith.addf %136, %138 : vector<2x64xf32>
    %cst_86 = arith.constant 0.000000e+00 : f32
    %140 = vector.broadcast %cst_86 : f32 to vector<2x64xf32>
    %141 = arith.maximumf %139, %140 : vector<2x64xf32>
    %c0_87 = arith.constant 0 : index
    %c0_88 = arith.constant 0 : index
    %142 = vector.load %arg9[%c0_87, %c0_88] : memref<64x3xf32, #tpu.memory_space<vmem>>, vector<64x3xf32>
    %cst_89 = arith.constant dense<0.000000e+00> : vector<2x3xf32>
    %143 = tpu.matmul %141, %142, %cst_89 {dimension_numbers = #tpu.dot_dimension_numbers<[1], [0], [0], [1], [0, 0, 1, 1], [], []>} : vector<2x64xf32>, vector<64x3xf32>, vector<2x3xf32> -> vector<2x3xf32>
    %c0_90 = arith.constant 0 : index
    %c0_91 = arith.constant 0 : index
    %144 = vector.load %arg10[%c0_90, %c0_91] : memref<1x3xf32, #tpu.memory_space<vmem>>, vector<1x3xf32>
    %145 = vector.broadcast %144 : vector<1x3xf32> to vector<2x3xf32>
    %146 = arith.addf %143, %145 : vector<2x3xf32>
    %c0_92 = arith.constant 0 : index
    %c0_93 = arith.constant 0 : index
    %147 = vector.load %arg11[%c0_92, %c0_93] : memref<2x3xf32, #tpu.memory_space<vmem>>, vector<2x3xf32>
    tpu.vector_store %arg11[%c0_92, %c0_93], %146 {strides = array<i32>} : memref<2x3xf32, #tpu.memory_space<vmem>>, vector<2x3xf32>,
    return
  }
}

</mosaic_0001>

<llo_original>
// kernel: classification_cnn_forward.1
$region0: #{classification_cnn_forward.1}
  #allocation0 [shape = 'u32[]', space=smem, size = 0x4, offset = 0x4, fixed_abs, tag = 'smem constant byte address 0x4 - core index']
  #allocation1 [shape = 'u32[144,128]{1,0:T(1,128)}', space=vmem, size = 0x12000, scoped, tag = 'internal scratch']
  #allocation2 [shape = 'f32[40,32]{1,0:T(8,128)}', space=vmem, size = 0x5000, scoped, tag = 'scratch operand']
  #allocation3 [shape = 'f32[36,32]{1,0:T(8,128)}', space=vmem, size = 0x5000, scoped, tag = 'scratch operand']
  %s0 = inlined_call_operand.vmem [shape: f32[32,1], index: 0, kind: input, shape index: {}]
  %s1 = inlined_call_operand.vmem [shape: f32[5,1,32], index: 1, kind: input, shape index: {}]
  %s2 = inlined_call_operand.vmem [shape: f32[1,32], index: 2, kind: input, shape index: {}]
  %s3 = inlined_call_operand.vmem [shape: f32[1,32], index: 3, kind: input, shape index: {}]
  %s4 = inlined_call_operand.vmem [shape: f32[3,32,64], index: 4, kind: input, shape index: {}]
  %s5 = inlined_call_operand.vmem [shape: f32[1,64], index: 5, kind: input, shape index: {}]
  %s6 = inlined_call_operand.vmem [shape: f32[1,64], index: 6, kind: input, shape index: {}]
  %s7 = inlined_call_operand.vmem [shape: f32[1024,64], index: 7, kind: input, shape index: {}]
  %s8 = inlined_call_operand.vmem [shape: f32[1,64], index: 8, kind: input, shape index: {}]
  %s9 = inlined_call_operand.vmem [shape: f32[64,3], index: 9, kind: input, shape index: {}]
  %s10 = inlined_call_operand.vmem [shape: f32[1,3], index: 10, kind: input, shape index: {}]
  %s11 = inlined_call_operand.hbm [shape: f32[2,3], index: 11, kind: output, shape index: {}]
  %s12 = sld [smem:[#allocation0]]
  $region54: #{classification_cnn_forward.1} parent=0
    _
  %s14 = ssub.s32 1, %s12
  %s15 = scalar_select 0, %s14, %s12
  $region1: #{classification_cnn_forward.1} parent=0
    #allocation4 [shape = 'u8[1024]{0}', space=vmem, size = 0x400, scoped, tag = 'output window, operand 0, single buffered']
    #allocation5 [shape = 's32[1]{0}', space=sflag, size = 0x4, scoped, tag = 'scoped memory for classification_cnn_forward.1']
    %16 = vsyncpa [#allocation5], 0
    // Predicated region
    $region2: #{classification_cnn_forward.1} parent=1 // pred_check
      _
    $region3: #{classification_cnn_forward.1} parent=1 // pred_check_branch
      %18 = sbr.rel (0) target = $region5
    $region4: #{classification_cnn_forward.1} parent=1 // pred_region
      _
    $region5: #{classification_cnn_forward.1} parent=1 // pred_fallthru
      _
    // Predicated region
    $region6: #{classification_cnn_forward.1} parent=1 // pred_check
      _
    $region7: #{classification_cnn_forward.1} parent=1 // pred_check_branch
      %20 = sbr.rel (0) target = $region9
    $region8: #{classification_cnn_forward.1} parent=1 // pred_region
      _
    $region9: #{classification_cnn_forward.1} parent=1 // pred_fallthru
      _
    // Predicated region
    $region10: #{classification_cnn_forward.1} parent=1 // pred_check
      _
    $region11: #{classification_cnn_forward.1} parent=1 // pred_check_branch
      %22 = sbr.rel (0) target = $region13
    $region12: #{classification_cnn_forward.1} parent=1 // pred_region
      _
    $region13: #{classification_cnn_forward.1} parent=1 // pred_fallthru
      _
    // Predicated region
    $region14: #{classification_cnn_forward.1} parent=1 // pred_check
      _
    $region15: #{classification_cnn_forward.1} parent=1 // pred_check_branch
      %24 = sbr.rel (0) target = $region17
    $region16: #{classification_cnn_forward.1} parent=1 // pred_region
      _
    $region17: #{classification_cnn_forward.1} parent=1 // pred_fallthru
      _
    // Predicated region
    $region18: #{classification_cnn_forward.1} parent=1 // pred_check
      _
    $region19: #{classification_cnn_forward.1} parent=1 // pred_check_branch
      %26 = sbr.rel (0) target = $region21
    $region20: #{classification_cnn_forward.1} parent=1 // pred_region
      _
    $region21: #{classification_cnn_forward.1} parent=1 // pred_fallthru
      _
    // Predicated region
    $region22: #{classification_cnn_forward.1} parent=1 // pred_check
      _
    $region23: #{classification_cnn_forward.1} parent=1 // pred_check_branch
      %28 = sbr.rel (0) target = $region25
    $region24: #{classification_cnn_forward.1} parent=1 // pred_region
      _
    $region25: #{classification_cnn_forward.1} parent=1 // pred_fallthru
      _
    // Predicated region
    $region26: #{classification_cnn_forward.1} parent=1 // pred_check
      _
    $region27: #{classification_cnn_forward.1} parent=1 // pred_check_branch
      %30 = sbr.rel (0) target = $region29
    $region28: #{classification_cnn_forward.1} parent=1 // pred_region
      _
    $region29: #{classification_cnn_forward.1} parent=1 // pred_fallthru
      _
    // Predicated region
    $region30: #{classification_cnn_forward.1} parent=1 // pred_check
      _
    $region31: #{classification_cnn_forward.1} parent=1 // pred_check_branch
      %32 = sbr.rel (0) target = $region33
    $region32: #{classification_cnn_forward.1} parent=1 // pred_region
      _
    $region33: #{classification_cnn_forward.1} parent=1 // pred_fallthru
      _
    // Predicated region
    $region34: #{classification_cnn_forward.1} parent=1 // pred_check
      _
    $region35: #{classification_cnn_forward.1} parent=1 // pred_check_branch
      %34 = sbr.rel (0) target = $region37
    $region36: #{classification_cnn_forward.1} parent=1 // pred_region
      _
    $region37: #{classification_cnn_forward.1} parent=1 // pred_fallthru
      _
    // Predicated region
    $region38: #{classification_cnn_forward.1} parent=1 // pred_check
      _
    $region39: #{classification_cnn_forward.1} parent=1 // pred_check_branch
      %36 = sbr.rel (0) target = $region41
    $region40: #{classification_cnn_forward.1} parent=1 // pred_region
      _
    $region41: #{classification_cnn_forward.1} parent=1 // pred_fallthru
      _
    // Predicated region
    $region42: #{classification_cnn_forward.1} parent=1 // pred_check
      _
    $region43: #{classification_cnn_forward.1} parent=1 // pred_check_branch
      %38 = sbr.rel (0) target = $region45
    $region44: #{classification_cnn_forward.1} parent=1 // pred_region
      _
    $region45: #{classification_cnn_forward.1} parent=1 // pred_fallthru
      _
    %vm39 = vcmask 257024
    %40 = vst.msk [vmem:[#allocation2] sm:$0xf] %vm39, 0.0
    %41 = vst.msk [vmem:[#allocation2 + $0x24] sm:$0xf] %vm39, 0.0
    %v42 = vld [vmem:[%s0] sm:$0xff]
    %v43 = vld [vmem:[%s0 + $0x8] sm:$0xff]
    %v44 = vld [vmem:[%s0 + $0x10] sm:$0xff]
    %v45 = vld [vmem:[%s0 + $0x18] sm:$0xff]
    %47 = vset.pattern.permute.xlu0 0
    %48 = vperm.xlu0 %47, %v42
    %v49 = vpop.permute.xlu0 %48
    %52 = vset.pattern.permute.xlu0 0
    %53 = vperm.xlu0 %52, %v43
    %v54 = vpop.permute.xlu0 %53
    %57 = vset.pattern.permute.xlu0 0
    %58 = vperm.xlu0 %57, %v44
    %v59 = vpop.permute.xlu0 %58
    %62 = vset.pattern.permute.xlu0 0
    %63 = vperm.xlu0 %62, %v45
    %v64 = vpop.permute.xlu0 %63
    %vm66 = vcmask 261120
    %67 = vst.msk [vmem:[#allocation2 + $0x4] sm:$0xff] %vm66, %v49
    %68 = vst.msk [vmem:[#allocation2 + $0xc] sm:$0xff] %vm66, %v54
    %69 = vst.msk [vmem:[#allocation2 + $0x14] sm:$0xff] %vm66, %v59
    %70 = vst.msk [vmem:[#allocation2 + $0x1c] sm:$0xff] %vm66, %v64
    %v71 = vld [vmem:[#allocation2] sm:$0xff]
    %v72 = vld [vmem:[#allocation2 + $0x8] sm:$0xff]
    %v73 = vld [vmem:[#allocation2 + $0x10] sm:$0xff]
    %v74 = vld [vmem:[#allocation2 + $0x18] sm:$0xff]
    %v75 = vld [vmem:[#allocation2 + $0x20] sm:$0xff]
    %v76 = vld [vmem:[%s1] sm:$0x1]
    %v78 = vlaneseq
    %v79 = vshrl.u32 %v78, 7
    %v80 = vsub.s32 0, %v79
    %v81 = vrot.slane %v76, %v80
    %v83 = vmul.f32 %v71, %v81
    %v84 = vmul.f32 %v72, %v81
    %v85 = vmul.f32 %v73, %v81
    %v86 = vmul.f32 %v74, %v81
    %s87 = scalar_lea.vmem %s1, 1
    %v88 = vld [vmem:[%s87] sm:$0x1]
    %v90 = vlaneseq
    %v91 = vshrl.u32 %v90, 7
    %v92 = vsub.s32 0, %v91
    %v93 = vrot.slane %v88, %v92
    %v95 = vmul.f32 %v71, %v93
    %v96 = vmul.f32 %v72, %v93
    %v97 = vmul.f32 %v73, %v93
    %v98 = vmul.f32 %v74, %v93
    %v99 = vmul.f32 %v75, %v93
    %vm105 = vcmask 1045504
    %v106 = vrot.slane %v95, 2
    %v107 = vrot.slane %v96, 2
    %v108 = vsel %vm105, %v106, %v107
    %v109 = vrot.slane %v97, 2
    %v110 = vsel %vm105, %v107, %v109
    %v111 = vrot.slane %v98, 2
    %v112 = vsel %vm105, %v109, %v111
    %v113 = vrot.slane %v99, 2
    %v114 = vsel %vm105, %v111, %v113
    %v119 = vadd.f32 %v83, %v108
    %v120 = vadd.f32 %v84, %v110
    %v121 = vadd.f32 %v85, %v112
    %v122 = vadd.f32 %v86, %v114
    %s123 = scalar_lea.vmem %s1, 2
    %v124 = vld [vmem:[%s123] sm:$0x1]
    %v126 = vlaneseq
    %v127 = vshrl.u32 %v126, 7
    %v128 = vsub.s32 0, %v127
    %v129 = vrot.slane %v124, %v128
    %v131 = vmul.f32 %v71, %v129
    %v132 = vmul.f32 %v72, %v129
    %v133 = vmul.f32 %v73, %v129
    %v134 = vmul.f32 %v74, %v129
    %v135 = vmul.f32 %v75, %v129
    %vm141 = vcmask 1043456
    %v142 = vrot.slane %v131, 4
    %v143 = vrot.slane %v132, 4
    %v144 = vsel %vm141, %v142, %v143
    %v145 = vrot.slane %v133, 4
    %v146 = vsel %vm141, %v143, %v145
    %v147 = vrot.slane %v134, 4
    %v148 = vsel %vm141, %v145, %v147
    %v149 = vrot.slane %v135, 4
    %v150 = vsel %vm141, %v147, %v149
    %v155 = vadd.f32 %v119, %v144
    %v156 = vadd.f32 %v120, %v146
    %v157 = vadd.f32 %v121, %v148
    %v158 = vadd.f32 %v122, %v150
    %s159 = scalar_lea.vmem %s1, 3
    %v160 = vld [vmem:[%s159] sm:$0x1]
    %v162 = vlaneseq
    %v163 = vshrl.u32 %v162, 7
    %v164 = vsub.s32 0, %v163
    %v165 = vrot.slane %v160, %v164
    %v167 = vmul.f32 %v71, %v165
    %v168 = vmul.f32 %v72, %v165
    %v169 = vmul.f32 %v73, %v165
    %v170 = vmul.f32 %v74, %v165
    %v171 = vmul.f32 %v75, %v165
    %vm177 = vcmask 1041408
    %v178 = vrot.slane %v167, 6
    %v179 = vrot.slane %v168, 6
    %v180 = vsel %vm177, %v178, %v179
    %v181 = vrot.slane %v169, 6
    %v182 = vsel %vm177, %v179, %v181
    %v183 = vrot.slane %v170, 6
    %v184 = vsel %vm177, %v181, %v183
    %v185 = vrot.slane %v171, 6
    %v186 = vsel %vm177, %v183, %v185
    %v191 = vadd.f32 %v155, %v180
    %v192 = vadd.f32 %v156, %v182
    %v193 = vadd.f32 %v157, %v184
    %v194 = vadd.f32 %v158, %v186
    %s195 = scalar_lea.vmem %s1, 4
    %v196 = vld [vmem:[%s195] sm:$0x1]
    %v198 = vlaneseq
    %v199 = vshrl.u32 %v198, 7
    %v200 = vsub.s32 0, %v199
    %v201 = vrot.slane %v196, %v200
    %v203 = vmul.f32 %v72, %v201
    %v204 = vmul.f32 %v73, %v201
    %v205 = vmul.f32 %v74, %v201
    %v206 = vmul.f32 %v75, %v201
    %v207 = vadd.f32 %v191, %v203
    %v208 = vadd.f32 %v192, %v204
    %v209 = vadd.f32 %v193, %v205
    %v210 = vadd.f32 %v194, %v206
    %v211 = vld [vmem:[%s2] sm:$0x1]
    %v213 = vlaneseq
    %v214 = vshrl.u32 %v213, 7
    %v215 = vsub.s32 0, %v214
    %v216 = vrot.slane %v211, %v215
    %v218 = vmul.f32 %v207, %v216
    %v219 = vmul.f32 %v208, %v216
    %v220 = vmul.f32 %v209, %v216
    %v221 = vmul.f32 %v210, %v216
    %v222 = vld [vmem:[%s3] sm:$0x1]
    %v224 = vlaneseq
    %v225 = vshrl.u32 %v224, 7
    %v226 = vsub.s32 0, %v225
    %v227 = vrot.slane %v222, %v226
    %v229 = vadd.f32 %v218, %v227
    %v230 = vadd.f32 %v219, %v227
    %v231 = vadd.f32 %v220, %v227
    %v232 = vadd.f32 %v221, %v227
    %v233 = vmax.f32 %v229, 0.0
    %v234 = vmax.f32 %v230, 0.0
    %v235 = vmax.f32 %v231, 0.0
    %v236 = vmax.f32 %v232, 0.0
    %vm237 = vcmask 254976
    %238 = vst.msk [vmem:[#allocation3] sm:$0x3] %vm237, 0.0
    %239 = vst.msk [vmem:[#allocation3 + $0x22] sm:$0x3] %vm237, 0.0
    %240 = vst.msk [vmem:[#allocation3 + $0x2] sm:$0xff] %vm66, %v233
    %241 = vst.msk [vmem:[#allocation3 + $0xa] sm:$0xff] %vm66, %v234
    %242 = vst.msk [vmem:[#allocation3 + $0x12] sm:$0xff] %vm66, %v235
    %243 = vst.msk [vmem:[#allocation3 + $0x1a] sm:$0xff] %vm66, %v236
    %v244 = vld [vmem:[#allocation3] sm:$0xff]
    %v245 = vld [vmem:[#allocation3 + $0x8] sm:$0xff]
    %v246 = vld [vmem:[#allocation3 + $0x10] sm:$0xff]
    %v247 = vld [vmem:[#allocation3 + $0x18] sm:$0xff]
    %v248 = vld [vmem:[#allocation3 + $0x20] sm:$0xf]
    %v249 = vld [vmem:[%s4] sm:$0xff]
    %v250 = vld [vmem:[%s4 + $0x8] sm:$0xff]
    %v251 = vld [vmem:[%s4 + $0x10] sm:$0xff]
    %v252 = vld [vmem:[%s4 + $0x18] sm:$0xff]
    %s253 = scalar_lea.vmem %s4, 32
    %v254 = vld [vmem:[%s253] sm:$0xff]
    %v255 = vld [vmem:[%s253 + $0x8] sm:$0xff]
    %v256 = vld [vmem:[%s253 + $0x10] sm:$0xff]
    %v257 = vld [vmem:[%s253 + $0x18] sm:$0xff]
    %v263 = vrot.slane %v244, 2
    %v264 = vrot.slane %v245, 2
    %v265 = vsel %vm105, %v263, %v264
    %v266 = vrot.slane %v246, 2
    %v267 = vsel %vm105, %v264, %v266
    %v268 = vrot.slane %v247, 2
    %v269 = vsel %vm105, %v266, %v268
    %v270 = vrot.slane %v248, 2
    %v271 = vsel %vm105, %v268, %v270
    %v272 = vsel %vm66, %v265, 0
    %v274 = vsel %vm66, %v267, 0
    %v276 = vsel %vm66, %v269, 0
    %v278 = vsel %vm66, %v271, 0
    %280 = vmatprep.subr.mxu0 0.0
    %281 = vmatpush1.msra.mxu0 %v254
    %282 = vmatprep.subr.mxu0 0.0
    %283 = vmatpush1.msra.mxu0 %v255
    %284 = vmatprep.subr.mxu0 0.0
    %285 = vmatpush1.msra.mxu0 %v256
    %286 = vmatprep.subr.mxu0 0.0
    %287 = vmatpush1.msra.mxu0 %v257
    %288 = vmatprep.subr.mxu0 0.0
    %289 = vmatpush1.msra.mxu0 0.0
    %290 = vmatprep.subr.mxu0 0.0
    %291 = vmatpush1.msra.mxu0 0.0
    %292 = vmatprep.subr.mxu0 0.0
    %293 = vmatpush1.msra.mxu0 0.0
    %294 = vmatprep.subr.mxu0 0.0
    %295 = vmatpush1.msra.mxu0 0.0
    %296 = vmatprep.subr.mxu0 0.0
    %297 = vmatpush1.msra.mxu0 0.0
    %298 = vmatprep.subr.mxu0 0.0
    %299 = vmatpush1.msra.mxu0 0.0
    %300 = vmatprep.subr.mxu0 0.0
    %301 = vmatpush1.msra.mxu0 0.0
    %302 = vmatprep.subr.mxu0 0.0
    %303 = vmatpush1.msra.mxu0 0.0
    %304 = vmatprep.subr.mxu0 0.0
    %305 = vmatpush1.msra.mxu0 0.0
    %306 = vmatprep.subr.mxu0 0.0
    %307 = vmatpush1.msra.mxu0 0.0
    %308 = vmatprep.subr.mxu0 0.0
    %309 = vmatpush1.msra.mxu0 0.0
    %310 = vmatprep.subr.mxu0 0.0
    %311 = vmatpush1.msra.mxu0 0.0
    %312 = vmatprep.subr.mxu0 0.0
    %313 = vmatpush1.msra.mxu0 0.0
    %314 = vmatprep.subr.mxu0 0.0
    %315 = vmatpush1.msra.mxu0 0.0
    %316 = vmatprep.subr.mxu0 0.0
    %317 = vmatpush1.msra.mxu0 0.0
    %318 = vmatprep.subr.mxu0 0.0
    %319 = vmatpush1.msra.mxu0 0.0
    %320 = vmatprep.subr.mxu0 0.0
    %321 = vmatpush1.msra.mxu0 0.0
    %322 = vmatprep.subr.mxu0 0.0
    %323 = vmatpush1.msra.mxu0 0.0
    %324 = vmatprep.subr.mxu0 0.0
    %325 = vmatpush1.msra.mxu0 0.0
    %326 = vmatprep.subr.mxu0 0.0
    %327 = vmatpush1.msra.mxu0 0.0
    %328 = vmatprep.subr.mxu0 0.0
    %329 = vmatpush1.msra.mxu0 0.0
    %330 = vmatprep.subr.mxu0 0.0
    %331 = vmatpush1.msra.mxu0 0.0
    %332 = vmatprep.subr.mxu0 0.0
    %333 = vmatpush1.msra.mxu0 0.0
    %334 = vmatprep.subr.mxu0 0.0
    %335 = vmatpush1.msra.mxu0 0.0
    %336 = vmatprep.subr.mxu0 0.0
    %337 = vmatpush1.msra.mxu0 0.0
    %338 = vmatprep.subr.mxu0 0.0
    %339 = vmatpush1.msra.mxu0 0.0
    %340 = vmatprep.subr.mxu0 0.0
    %341 = vmatpush1.msra.mxu0 0.0
    %342 = vmatprep.subr.mxu0 0.0
    %343 = vmatpush1.msra.mxu0 0.0
    %344 = vmatprep.mubr.f32.mxu0 0.0
    %345 = vmatmul.mubr.f32.gmra.mrb[0].mxu0 %v272
    %v346 = vpop.f32.mrb[0].mxu0
    %v347 = vadd.f32 0.0, %v346
    %v348 = vpop.f32.mrb[0].mxu0
    %349 = vmatprep.mubr.f32.mxu0 0.0
    %350 = vmatmul.mubr.f32.gmra.mrb[0].mxu0 %v274
    %v351 = vpop.f32.mrb[0].mxu0
    %v352 = vadd.f32 0.0, %v351
    %v353 = vpop.f32.mrb[0].mxu0
    %354 = vmatprep.mubr.f32.mxu0 0.0
    %355 = vmatmul.mubr.f32.gmra.mrb[0].mxu0 %v276
    %v356 = vpop.f32.mrb[0].mxu0
    %v357 = vadd.f32 0.0, %v356
    %v358 = vpop.f32.mrb[0].mxu0
    %359 = vmatprep.mubr.f32.mxu0 0.0
    %360 = vmatmul.mubr.f32.gmra.mrb[0].mxu0 %v278
    %v361 = vpop.f32.mrb[0].mxu0
    %v362 = vadd.f32 0.0, %v361
    %v363 = vpop.f32.mrb[0].mxu0
    %364 = vdwg.mxu0
    %v365 = vsel %vm66, %v244, 0
    %v367 = vsel %vm66, %v245, 0
    %v369 = vsel %vm66, %v246, 0
    %v371 = vsel %vm66, %v247, 0
    %373 = vmatprep.subr.mxu0 0.0
    %374 = vmatpush1.msra.mxu0 %v249
    %375 = vmatprep.subr.mxu0 0.0
    %376 = vmatpush1.msra.mxu0 %v250
    %377 = vmatprep.subr.mxu0 0.0
    %378 = vmatpush1.msra.mxu0 %v251
    %379 = vmatprep.subr.mxu0 0.0
    %380 = vmatpush1.msra.mxu0 %v252
    %381 = vmatprep.subr.mxu0 0.0
    %382 = vmatpush1.msra.mxu0 0.0
    %383 = vmatprep.subr.mxu0 0.0
    %384 = vmatpush1.msra.mxu0 0.0
    %385 = vmatprep.subr.mxu0 0.0
    %386 = vmatpush1.msra.mxu0 0.0
    %387 = vmatprep.subr.mxu0 0.0
    %388 = vmatpush1.msra.mxu0 0.0
    %389 = vmatprep.subr.mxu0 0.0
    %390 = vmatpush1.msra.mxu0 0.0
    %391 = vmatprep.subr.mxu0 0.0
    %392 = vmatpush1.msra.mxu0 0.0
    %393 = vmatprep.subr.mxu0 0.0
    %394 = vmatpush1.msra.mxu0 0.0
    %395 = vmatprep.subr.mxu0 0.0
    %396 = vmatpush1.msra.mxu0 0.0
    %397 = vmatprep.subr.mxu0 0.0
    %398 = vmatpush1.msra.mxu0 0.0
    %399 = vmatprep.subr.mxu0 0.0
    %400 = vmatpush1.msra.mxu0 0.0
    %401 = vmatprep.subr.mxu0 0.0
    %402 = vmatpush1.msra.mxu0 0.0
    %403 = vmatprep.subr.mxu0 0.0
    %404 = vmatpush1.msra.mxu0 0.0
    %405 = vmatprep.subr.mxu0 0.0
    %406 = vmatpush1.msra.mxu0 0.0
    %407 = vmatprep.subr.mxu0 0.0
    %408 = vmatpush1.msra.mxu0 0.0
    %409 = vmatprep.subr.mxu0 0.0
    %410 = vmatpush1.msra.mxu0 0.0
    %411 = vmatprep.subr.mxu0 0.0
    %412 = vmatpush1.msra.mxu0 0.0
    %413 = vmatprep.subr.mxu0 0.0
    %414 = vmatpush1.msra.mxu0 0.0
    %415 = vmatprep.subr.mxu0 0.0
    %416 = vmatpush1.msra.mxu0 0.0
    %417 = vmatprep.subr.mxu0 0.0
    %418 = vmatpush1.msra.mxu0 0.0
    %419 = vmatprep.subr.mxu0 0.0
    %420 = vmatpush1.msra.mxu0 0.0
    %421 = vmatprep.subr.mxu0 0.0
    %422 = vmatpush1.msra.mxu0 0.0
    %423 = vmatprep.subr.mxu0 0.0
    %424 = vmatpush1.msra.mxu0 0.0
    %425 = vmatprep.subr.mxu0 0.0
    %426 = vmatpush1.msra.mxu0 0.0
    %427 = vmatprep.subr.mxu0 0.0
    %428 = vmatpush1.msra.mxu0 0.0
    %429 = vmatprep.subr.mxu0 0.0
    %430 = vmatpush1.msra.mxu0 0.0
    %431 = vmatprep.subr.mxu0 0.0
    %432 = vmatpush1.msra.mxu0 0.0
    %433 = vmatprep.subr.mxu0 0.0
    %434 = vmatpush1.msra.mxu0 0.0
    %435 = vmatprep.subr.mxu0 0.0
    %436 = vmatpush1.msra.mxu0 0.0
    %437 = vmatprep.mubr.f32.mxu0 0.0
    %438 = vmatmul.mubr.f32.gmra.mrb[0].mxu0 %v365
    %v439 = vpop.f32.mrb[0].mxu0
    %v440 = vadd.f32 %v347, %v439
    %v441 = vpop.f32.mrb[0].mxu0
    %442 = vmatprep.mubr.f32.mxu0 0.0
    %443 = vmatmul.mubr.f32.gmra.mrb[0].mxu0 %v367
    %v444 = vpop.f32.mrb[0].mxu0
    %v445 = vadd.f32 %v352, %v444
    %v446 = vpop.f32.mrb[0].mxu0
    %447 = vmatprep.mubr.f32.mxu0 0.0
    %448 = vmatmul.mubr.f32.gmra.mrb[0].mxu0 %v369
    %v449 = vpop.f32.mrb[0].mxu0
    %v450 = vadd.f32 %v357, %v449
    %v451 = vpop.f32.mrb[0].mxu0
    %452 = vmatprep.mubr.f32.mxu0 0.0
    %453 = vmatmul.mubr.f32.gmra.mrb[0].mxu0 %v371
    %v454 = vpop.f32.mrb[0].mxu0
    %v455 = vadd.f32 %v362, %v454
    %v456 = vpop.f32.mrb[0].mxu0
    %457 = vdwg.mxu0
    %s458 = scalar_lea.vmem %s4, 64
    %v459 = vld [vmem:[%s458] sm:$0xff]
    %v460 = vld [vmem:[%s458 + $0x8] sm:$0xff]
    %v461 = vld [vmem:[%s458 + $0x10] sm:$0xff]
    %v462 = vld [vmem:[%s458 + $0x18] sm:$0xff]
    %v463 = vrot.slane %v244, 4
    %v464 = vrot.slane %v245, 4
    %v465 = vsel %vm141, %v463, %v464
    %v466 = vrot.slane %v246, 4
    %v467 = vsel %vm141, %v464, %v466
    %v468 = vrot.slane %v247, 4
    %v469 = vsel %vm141, %v466, %v468
    %v470 = vrot.slane %v248, 4
    %v471 = vsel %vm141, %v468, %v470
    %v472 = vsel %vm66, %v465, 0
    %v474 = vsel %vm66, %v467, 0
    %v476 = vsel %vm66, %v469, 0
    %v478 = vsel %vm66, %v471, 0
    %480 = vmatprep.subr.mxu0 0.0
    %481 = vmatpush1.msra.mxu0 %v459
    %482 = vmatprep.subr.mxu0 0.0
    %483 = vmatpush1.msra.mxu0 %v460
    %484 = vmatprep.subr.mxu0 0.0
    %485 = vmatpush1.msra.mxu0 %v461
    %486 = vmatprep.subr.mxu0 0.0
    %487 = vmatpush1.msra.mxu0 %v462
    %488 = vmatprep.subr.mxu0 0.0
    %489 = vmatpush1.msra.mxu0 0.0
    %490 = vmatprep.subr.mxu0 0.0
    %491 = vmatpush1.msra.mxu0 0.0
    %492 = vmatprep.subr.mxu0 0.0
    %493 = vmatpush1.msra.mxu0 0.0
    %494 = vmatprep.subr.mxu0 0.0
    %495 = vmatpush1.msra.mxu0 0.0
    %496 = vmatprep.subr.mxu0 0.0
    %497 = vmatpush1.msra.mxu0 0.0
    %498 = vmatprep.subr.mxu0 0.0
    %499 = vmatpush1.msra.mxu0 0.0
    %500 = vmatprep.subr.mxu0 0.0
    %501 = vmatpush1.msra.mxu0 0.0
    %502 = vmatprep.subr.mxu0 0.0
    %503 = vmatpush1.msra.mxu0 0.0
    %504 = vmatprep.subr.mxu0 0.0
    %505 = vmatpush1.msra.mxu0 0.0
    %506 = vmatprep.subr.mxu0 0.0
    %507 = vmatpush1.msra.mxu0 0.0
    %508 = vmatprep.subr.mxu0 0.0
    %509 = vmatpush1.msra.mxu0 0.0
    %510 = vmatprep.subr.mxu0 0.0
    %511 = vmatpush1.msra.mxu0 0.0
    %512 = vmatprep.subr.mxu0 0.0
    %513 = vmatpush1.msra.mxu0 0.0
    %514 = vmatprep.subr.mxu0 0.0
    %515 = vmatpush1.msra.mxu0 0.0
    %516 = vmatprep.subr.mxu0 0.0
    %517 = vmatpush1.msra.mxu0 0.0
    %518 = vmatprep.subr.mxu0 0.0
    %519 = vmatpush1.msra.mxu0 0.0
    %520 = vmatprep.subr.mxu0 0.0
    %521 = vmatpush1.msra.mxu0 0.0
    %522 = vmatprep.subr.mxu0 0.0
    %523 = vmatpush1.msra.mxu0 0.0
    %524 = vmatprep.subr.mxu0 0.0
    %525 = vmatpush1.msra.mxu0 0.0
    %526 = vmatprep.subr.mxu0 0.0
    %527 = vmatpush1.msra.mxu0 0.0
    %528 = vmatprep.subr.mxu0 0.0
    %529 = vmatpush1.msra.mxu0 0.0
    %530 = vmatprep.subr.mxu0 0.0
    %531 = vmatpush1.msra.mxu0 0.0
    %532 = vmatprep.subr.mxu0 0.0
    %533 = vmatpush1.msra.mxu0 0.0
    %534 = vmatprep.subr.mxu0 0.0
    %535 = vmatpush1.msra.mxu0 0.0
    %536 = vmatprep.subr.mxu0 0.0
    %537 = vmatpush1.msra.mxu0 0.0
    %538 = vmatprep.subr.mxu0 0.0
    %539 = vmatpush1.msra.mxu0 0.0
    %540 = vmatprep.subr.mxu0 0.0
    %541 = vmatpush1.msra.mxu0 0.0
    %542 = vmatprep.subr.mxu0 0.0
    %543 = vmatpush1.msra.mxu0 0.0
    %544 = vmatprep.mubr.f32.mxu0 0.0
    %545 = vmatmul.mubr.f32.gmra.mrb[0].mxu0 %v472
    %v546 = vpop.f32.mrb[0].mxu0
    %v547 = vadd.f32 0.0, %v546
    %v548 = vpop.f32.mrb[0].mxu0
    %549 = vmatprep.mubr.f32.mxu0 0.0
    %550 = vmatmul.mubr.f32.gmra.mrb[0].mxu0 %v474
    %v551 = vpop.f32.mrb[0].mxu0
    %v552 = vadd.f32 0.0, %v551
    %v553 = vpop.f32.mrb[0].mxu0
    %554 = vmatprep.mubr.f32.mxu0 0.0
    %555 = vmatmul.mubr.f32.gmra.mrb[0].mxu0 %v476
    %v556 = vpop.f32.mrb[0].mxu0
    %v557 = vadd.f32 0.0, %v556
    %v558 = vpop.f32.mrb[0].mxu0
    %559 = vmatprep.mubr.f32.mxu0 0.0
    %560 = vmatmul.mubr.f32.gmra.mrb[0].mxu0 %v478
    %v561 = vpop.f32.mrb[0].mxu0
    %v562 = vadd.f32 0.0, %v561
    %v563 = vpop.f32.mrb[0].mxu0
    %564 = vdwg.mxu0
    %v565 = vadd.f32 %v440, %v547
    %v566 = vadd.f32 %v445, %v552
    %v567 = vadd.f32 %v450, %v557
    %v568 = vadd.f32 %v455, %v562
    %v569 = vld [vmem:[%s5] sm:$0x1]
    %v571 = vlaneseq
    %v572 = vshrl.u32 %v571, 7
    %v573 = vsub.s32 0, %v572
    %v574 = vrot.slane %v569, %v573
    %v576 = vmul.f32 %v565, %v574
    %v577 = vmul.f32 %v566, %v574
    %v578 = vmul.f32 %v567, %v574
    %v579 = vmul.f32 %v568, %v574
    %v580 = vld [vmem:[%s6] sm:$0x1]
    %v582 = vlaneseq
    %v583 = vshrl.u32 %v582, 7
    %v584 = vsub.s32 0, %v583
    %v585 = vrot.slane %v580, %v584
    %v587 = vadd.f32 %v576, %v585
    %v588 = vadd.f32 %v577, %v585
    %v589 = vadd.f32 %v578, %v585
    %v590 = vadd.f32 %v579, %v585
    %v591 = vmax.f32 %v587, 0.0
    %v592 = vmax.f32 %v588, 0.0
    %v593 = vmax.f32 %v589, 0.0
    %v594 = vmax.f32 %v590, 0.0
    %v595 = vld [vmem:[%s7] sm:$0xff]
    %v596 = vld [vmem:[%s7 + $0x8] sm:$0xff]
    %v597 = vld [vmem:[%s7 + $0x10] sm:$0xff]
    %v598 = vld [vmem:[%s7 + $0x18] sm:$0xff]
    %v599 = vld [vmem:[%s7 + $0x20] sm:$0xff]
    %v600 = vld [vmem:[%s7 + $0x28] sm:$0xff]
    %v601 = vld [vmem:[%s7 + $0x30] sm:$0xff]
    %v602 = vld [vmem:[%s7 + $0x38] sm:$0xff]
    %v603 = vld [vmem:[%s7 + $0x40] sm:$0xff]
    %v604 = vld [vmem:[%s7 + $0x48] sm:$0xff]
    %v605 = vld [vmem:[%s7 + $0x50] sm:$0xff]
    %v606 = vld [vmem:[%s7 + $0x58] sm:$0xff]
    %v607 = vld [vmem:[%s7 + $0x60] sm:$0xff]
    %v608 = vld [vmem:[%s7 + $0x68] sm:$0xff]
    %v609 = vld [vmem:[%s7 + $0x70] sm:$0xff]
    %v610 = vld [vmem:[%s7 + $0x78] sm:$0xff]
    %v612 = vrot.slane %v591, 2
    %vm613 = vcmask 523264
    %v614 = vsel %vm613, %v612, 0
    %616 = vmatprep.subr.mxu0 0.0
    %617 = vmatpush1.msra.mxu0 %v603
    %618 = vmatprep.subr.mxu0 0.0
    %619 = vmatpush1.msra.mxu0 %v604
    %620 = vmatprep.subr.mxu0 0.0
    %621 = vmatpush1.msra.mxu0 %v605
    %622 = vmatprep.subr.mxu0 0.0
    %623 = vmatpush1.msra.mxu0 %v606
    %624 = vmatprep.subr.mxu0 0.0
    %625 = vmatpush1.msra.mxu0 %v607
    %626 = vmatprep.subr.mxu0 0.0
    %627 = vmatpush1.msra.mxu0 %v608
    %628 = vmatprep.subr.mxu0 0.0
    %629 = vmatpush1.msra.mxu0 %v609
    %630 = vmatprep.subr.mxu0 0.0
    %631 = vmatpush1.msra.mxu0 %v610
    %632 = vmatprep.subr.mxu0 0.0
    %633 = vmatpush1.msra.mxu0 0.0
    %634 = vmatprep.subr.mxu0 0.0
    %635 = vmatpush1.msra.mxu0 0.0
    %636 = vmatprep.subr.mxu0 0.0
    %637 = vmatpush1.msra.mxu0 0.0
    %638 = vmatprep.subr.mxu0 0.0
    %639 = vmatpush1.msra.mxu0 0.0
    %640 = vmatprep.subr.mxu0 0.0
    %641 = vmatpush1.msra.mxu0 0.0
    %642 = vmatprep.subr.mxu0 0.0
    %643 = vmatpush1.msra.mxu0 0.0
    %644 = vmatprep.subr.mxu0 0.0
    %645 = vmatpush1.msra.mxu0 0.0
    %646 = vmatprep.subr.mxu0 0.0
    %647 = vmatpush1.msra.mxu0 0.0
    %648 = vmatprep.subr.mxu0 0.0
    %649 = vmatpush1.msra.mxu0 0.0
    %650 = vmatprep.subr.mxu0 0.0
    %651 = vmatpush1.msra.mxu0 0.0
    %652 = vmatprep.subr.mxu0 0.0
    %653 = vmatpush1.msra.mxu0 0.0
    %654 = vmatprep.subr.mxu0 0.0
    %655 = vmatpush1.msra.mxu0 0.0
    %656 = vmatprep.subr.mxu0 0.0
    %657 = vmatpush1.msra.mxu0 0.0
    %658 = vmatprep.subr.mxu0 0.0
    %659 = vmatpush1.msra.mxu0 0.0
    %660 = vmatprep.subr.mxu0 0.0
    %661 = vmatpush1.msra.mxu0 0.0
    %662 = vmatprep.subr.mxu0 0.0
    %663 = vmatpush1.msra.mxu0 0.0
    %664 = vmatprep.subr.mxu0 0.0
    %665 = vmatpush1.msra.mxu0 0.0
    %666 = vmatprep.subr.mxu0 0.0
    %667 = vmatpush1.msra.mxu0 0.0
    %668 = vmatprep.subr.mxu0 0.0
    %669 = vmatpush1.msra.mxu0 0.0
    %670 = vmatprep.subr.mxu0 0.0
    %671 = vmatpush1.msra.mxu0 0.0
    %672 = vmatprep.subr.mxu0 0.0
    %673 = vmatpush1.msra.mxu0 0.0
    %674 = vmatprep.subr.mxu0 0.0
    %675 = vmatpush1.msra.mxu0 0.0
    %676 = vmatprep.subr.mxu0 0.0
    %677 = vmatpush1.msra.mxu0 0.0
    %678 = vmatprep.subr.mxu0 0.0
    %679 = vmatpush1.msra.mxu0 0.0
    %680 = vmatprep.mubr.f32.mxu0 0.0
    %681 = vmatmul.mubr.f32.gmra.mrb[0].mxu0 %v614
    %v682 = vpop.f32.mrb[0].mxu0
    %v683 = vadd.f32 0.0, %v682
    %v684 = vpop.f32.mrb[0].mxu0
    %685 = vdwg.mxu0
    %v686 = vsel %vm613, %v591, 0
    %688 = vmatprep.subr.mxu0 0.0
    %689 = vmatpush1.msra.mxu0 %v595
    %690 = vmatprep.subr.mxu0 0.0
    %691 = vmatpush1.msra.mxu0 %v596
    %692 = vmatprep.subr.mxu0 0.0
    %693 = vmatpush1.msra.mxu0 %v597
    %694 = vmatprep.subr.mxu0 0.0
    %695 = vmatpush1.msra.mxu0 %v598
    %696 = vmatprep.subr.mxu0 0.0
    %697 = vmatpush1.msra.mxu0 %v599
    %698 = vmatprep.subr.mxu0 0.0
    %699 = vmatpush1.msra.mxu0 %v600
    %700 = vmatprep.subr.mxu0 0.0
    %701 = vmatpush1.msra.mxu0 %v601
    %702 = vmatprep.subr.mxu0 0.0
    %703 = vmatpush1.msra.mxu0 %v602
    %704 = vmatprep.subr.mxu0 0.0
    %705 = vmatpush1.msra.mxu0 0.0
    %706 = vmatprep.subr.mxu0 0.0
    %707 = vmatpush1.msra.mxu0 0.0
    %708 = vmatprep.subr.mxu0 0.0
    %709 = vmatpush1.msra.mxu0 0.0
    %710 = vmatprep.subr.mxu0 0.0
    %711 = vmatpush1.msra.mxu0 0.0
    %712 = vmatprep.subr.mxu0 0.0
    %713 = vmatpush1.msra.mxu0 0.0
    %714 = vmatprep.subr.mxu0 0.0
    %715 = vmatpush1.msra.mxu0 0.0
    %716 = vmatprep.subr.mxu0 0.0
    %717 = vmatpush1.msra.mxu0 0.0
    %718 = vmatprep.subr.mxu0 0.0
    %719 = vmatpush1.msra.mxu0 0.0
    %720 = vmatprep.subr.mxu0 0.0
    %721 = vmatpush1.msra.mxu0 0.0
    %722 = vmatprep.subr.mxu0 0.0
    %723 = vmatpush1.msra.mxu0 0.0
    %724 = vmatprep.subr.mxu0 0.0
    %725 = vmatpush1.msra.mxu0 0.0
    %726 = vmatprep.subr.mxu0 0.0
    %727 = vmatpush1.msra.mxu0 0.0
    %728 = vmatprep.subr.mxu0 0.0
    %729 = vmatpush1.msra.mxu0 0.0
    %730 = vmatprep.subr.mxu0 0.0
    %731 = vmatpush1.msra.mxu0 0.0
    %732 = vmatprep.subr.mxu0 0.0
    %733 = vmatpush1.msra.mxu0 0.0
    %734 = vmatprep.subr.mxu0 0.0
    %735 = vmatpush1.msra.mxu0 0.0
    %736 = vmatprep.subr.mxu0 0.0
    %737 = vmatpush1.msra.mxu0 0.0
    %738 = vmatprep.subr.mxu0 0.0
    %739 = vmatpush1.msra.mxu0 0.0
    %740 = vmatprep.subr.mxu0 0.0
    %741 = vmatpush1.msra.mxu0 0.0
    %742 = vmatprep.subr.mxu0 0.0
    %743 = vmatpush1.msra.mxu0 0.0
    %744 = vmatprep.subr.mxu0 0.0
    %745 = vmatpush1.msra.mxu0 0.0
    %746 = vmatprep.subr.mxu0 0.0
    %747 = vmatpush1.msra.mxu0 0.0
    %748 = vmatprep.subr.mxu0 0.0
    %749 = vmatpush1.msra.mxu0 0.0
    %750 = vmatprep.subr.mxu0 0.0
    %751 = vmatpush1.msra.mxu0 0.0
    %752 = vmatprep.mubr.f32.mxu0 0.0
    %753 = vmatmul.mubr.f32.gmra.mrb[0].mxu0 %v686
    %v754 = vpop.f32.mrb[0].mxu0
    %v755 = vadd.f32 %v683, %v754
    %v756 = vpop.f32.mrb[0].mxu0
    %757 = vdwg.mxu0
    %v758 = vld [vmem:[%s7 + $0x80] sm:$0xff]
    %v759 = vld [vmem:[%s7 + $0x88] sm:$0xff]
    %v760 = vld [vmem:[%s7 + $0x90] sm:$0xff]
    %v761 = vld [vmem:[%s7 + $0x98] sm:$0xff]
    %v762 = vld [vmem:[%s7 + $0xa0] sm:$0xff]
    %v763 = vld [vmem:[%s7 + $0xa8] sm:$0xff]
    %v764 = vld [vmem:[%s7 + $0xb0] sm:$0xff]
    %v765 = vld [vmem:[%s7 + $0xb8] sm:$0xff]
    %v766 = vrot.slane %v591, 4
    %v767 = vsel %vm613, %v766, 0
    %769 = vmatprep.subr.mxu0 0.0
    %770 = vmatpush1.msra.mxu0 %v758
    %771 = vmatprep.subr.mxu0 0.0
    %772 = vmatpush1.msra.mxu0 %v759
    %773 = vmatprep.subr.mxu0 0.0
    %774 = vmatpush1.msra.mxu0 %v760
    %775 = vmatprep.subr.mxu0 0.0
    %776 = vmatpush1.msra.mxu0 %v761
    %777 = vmatprep.subr.mxu0 0.0
    %778 = vmatpush1.msra.mxu0 %v762
    %779 = vmatprep.subr.mxu0 0.0
    %780 = vmatpush1.msra.mxu0 %v763
    %781 = vmatprep.subr.mxu0 0.0
    %782 = vmatpush1.msra.mxu0 %v764
    %783 = vmatprep.subr.mxu0 0.0
    %784 = vmatpush1.msra.mxu0 %v765
    %785 = vmatprep.subr.mxu0 0.0
    %786 = vmatpush1.msra.mxu0 0.0
    %787 = vmatprep.subr.mxu0 0.0
    %788 = vmatpush1.msra.mxu0 0.0
    %789 = vmatprep.subr.mxu0 0.0
    %790 = vmatpush1.msra.mxu0 0.0
    %791 = vmatprep.subr.mxu0 0.0
    %792 = vmatpush1.msra.mxu0 0.0
    %793 = vmatprep.subr.mxu0 0.0
    %794 = vmatpush1.msra.mxu0 0.0
    %795 = vmatprep.subr.mxu0 0.0
    %796 = vmatpush1.msra.mxu0 0.0
    %797 = vmatprep.subr.mxu0 0.0
    %798 = vmatpush1.msra.mxu0 0.0
    %799 = vmatprep.subr.mxu0 0.0
    %800 = vmatpush1.msra.mxu0 0.0
    %801 = vmatprep.subr.mxu0 0.0
    %802 = vmatpush1.msra.mxu0 0.0
    %803 = vmatprep.subr.mxu0 0.0
    %804 = vmatpush1.msra.mxu0 0.0
    %805 = vmatprep.subr.mxu0 0.0
    %806 = vmatpush1.msra.mxu0 0.0
    %807 = vmatprep.subr.mxu0 0.0
    %808 = vmatpush1.msra.mxu0 0.0
    %809 = vmatprep.subr.mxu0 0.0
    %810 = vmatpush1.msra.mxu0 0.0
    %811 = vmatprep.subr.mxu0 0.0
    %812 = vmatpush1.msra.mxu0 0.0
    %813 = vmatprep.subr.mxu0 0.0
    %814 = vmatpush1.msra.mxu0 0.0
    %815 = vmatprep.subr.mxu0 0.0
    %816 = vmatpush1.msra.mxu0 0.0
    %817 = vmatprep.subr.mxu0 0.0
    %818 = vmatpush1.msra.mxu0 0.0
    %819 = vmatprep.subr.mxu0 0.0
    %820 = vmatpush1.msra.mxu0 0.0
    %821 = vmatprep.subr.mxu0 0.0
    %822 = vmatpush1.msra.mxu0 0.0
    %823 = vmatprep.subr.mxu0 0.0
    %824 = vmatpush1.msra.mxu0 0.0
    %825 = vmatprep.subr.mxu0 0.0
    %826 = vmatpush1.msra.mxu0 0.0
    %827 = vmatprep.subr.mxu0 0.0
    %828 = vmatpush1.msra.mxu0 0.0
    %829 = vmatprep.subr.mxu0 0.0
    %830 = vmatpush1.msra.mxu0 0.0
    %831 = vmatprep.subr.mxu0 0.0
    %832 = vmatpush1.msra.mxu0 0.0
    %833 = vmatprep.mubr.f32.mxu0 0.0
    %834 = vmatmul.mubr.f32.gmra.mrb[0].mxu0 %v767
    %v835 = vpop.f32.mrb[0].mxu0
    %v836 = vadd.f32 0.0, %v835
    %v837 = vpop.f32.mrb[0].mxu0
    %838 = vdwg.mxu0
    %v839 = vadd.f32 %v755, %v836
    %v840 = vld [vmem:[%s7 + $0xc0] sm:$0xff]
    %v841 = vld [vmem:[%s7 + $0xc8] sm:$0xff]
    %v842 = vld [vmem:[%s7 + $0xd0] sm:$0xff]
    %v843 = vld [vmem:[%s7 + $0xd8] sm:$0xff]
    %v844 = vld [vmem:[%s7 + $0xe0] sm:$0xff]
    %v845 = vld [vmem:[%s7 + $0xe8] sm:$0xff]
    %v846 = vld [vmem:[%s7 + $0xf0] sm:$0xff]
    %v847 = vld [vmem:[%s7 + $0xf8] sm:$0xff]
    %v848 = vrot.slane %v591, 6
    %v849 = vsel %vm613, %v848, 0
    %851 = vmatprep.subr.mxu0 0.0
    %852 = vmatpush1.msra.mxu0 %v840
    %853 = vmatprep.subr.mxu0 0.0
    %854 = vmatpush1.msra.mxu0 %v841
    %855 = vmatprep.subr.mxu0 0.0
    %856 = vmatpush1.msra.mxu0 %v842
    %857 = vmatprep.subr.mxu0 0.0
    %858 = vmatpush1.msra.mxu0 %v843
    %859 = vmatprep.subr.mxu0 0.0
    %860 = vmatpush1.msra.mxu0 %v844
    %861 = vmatprep.subr.mxu0 0.0
    %862 = vmatpush1.msra.mxu0 %v845
    %863 = vmatprep.subr.mxu0 0.0
    %864 = vmatpush1.msra.mxu0 %v846
    %865 = vmatprep.subr.mxu0 0.0
    %866 = vmatpush1.msra.mxu0 %v847
    %867 = vmatprep.subr.mxu0 0.0
    %868 = vmatpush1.msra.mxu0 0.0
    %869 = vmatprep.subr.mxu0 0.0
    %870 = vmatpush1.msra.mxu0 0.0
    %871 = vmatprep.subr.mxu0 0.0
    %872 = vmatpush1.msra.mxu0 0.0
    %873 = vmatprep.subr.mxu0 0.0
    %874 = vmatpush1.msra.mxu0 0.0
    %875 = vmatprep.subr.mxu0 0.0
    %876 = vmatpush1.msra.mxu0 0.0
    %877 = vmatprep.subr.mxu0 0.0
    %878 = vmatpush1.msra.mxu0 0.0
    %879 = vmatprep.subr.mxu0 0.0
    %880 = vmatpush1.msra.mxu0 0.0
    %881 = vmatprep.subr.mxu0 0.0
    %882 = vmatpush1.msra.mxu0 0.0
    %883 = vmatprep.subr.mxu0 0.0
    %884 = vmatpush1.msra.mxu0 0.0
    %885 = vmatprep.subr.mxu0 0.0
    %886 = vmatpush1.msra.mxu0 0.0
    %887 = vmatprep.subr.mxu0 0.0
    %888 = vmatpush1.msra.mxu0 0.0
    %889 = vmatprep.subr.mxu0 0.0
    %890 = vmatpush1.msra.mxu0 0.0
    %891 = vmatprep.subr.mxu0 0.0
    %892 = vmatpush1.msra.mxu0 0.0
    %893 = vmatprep.subr.mxu0 0.0
    %894 = vmatpush1.msra.mxu0 0.0
    %895 = vmatprep.subr.mxu0 0.0
    %896 = vmatpush1.msra.mxu0 0.0
    %897 = vmatprep.subr.mxu0 0.0
    %898 = vmatpush1.msra.mxu0 0.0
    %899 = vmatprep.subr.mxu0 0.0
    %900 = vmatpush1.msra.mxu0 0.0
    %901 = vmatprep.subr.mxu0 0.0
    %902 = vmatpush1.msra.mxu0 0.0
    %903 = vmatprep.subr.mxu0 0.0
    %904 = vmatpush1.msra.mxu0 0.0
    %905 = vmatprep.subr.mxu0 0.0
    %906 = vmatpush1.msra.mxu0 0.0
    %907 = vmatprep.subr.mxu0 0.0
    %908 = vmatpush1.msra.mxu0 0.0
    %909 = vmatprep.subr.mxu0 0.0
    %910 = vmatpush1.msra.mxu0 0.0
    %911 = vmatprep.subr.mxu0 0.0
    %912 = vmatpush1.msra.mxu0 0.0
    %913 = vmatprep.subr.mxu0 0.0
    %914 = vmatpush1.msra.mxu0 0.0
    %915 = vmatprep.mubr.f32.mxu0 0.0
    %916 = vmatmul.mubr.f32.gmra.mrb[0].mxu0 %v849
    %v917 = vpop.f32.mrb[0].mxu0
    %v918 = vadd.f32 0.0, %v917
    %v919 = vpop.f32.mrb[0].mxu0
    %920 = vdwg.mxu0
    %v921 = vadd.f32 %v839, %v918
    %v922 = vld [vmem:[%s7 + $0x100] sm:$0xff]
    %v923 = vld [vmem:[%s7 + $0x108] sm:$0xff]
    %v924 = vld [vmem:[%s7 + $0x110] sm:$0xff]
    %v925 = vld [vmem:[%s7 + $0x118] sm:$0xff]
    %v926 = vld [vmem:[%s7 + $0x120] sm:$0xff]
    %v927 = vld [vmem:[%s7 + $0x128] sm:$0xff]
    %v928 = vld [vmem:[%s7 + $0x130] sm:$0xff]
    %v929 = vld [vmem:[%s7 + $0x138] sm:$0xff]
    %v931 = vsel %vm613, %v592, 0
    %933 = vmatprep.subr.mxu0 0.0
    %934 = vmatpush1.msra.mxu0 %v922
    %935 = vmatprep.subr.mxu0 0.0
    %936 = vmatpush1.msra.mxu0 %v923
    %937 = vmatprep.subr.mxu0 0.0
    %938 = vmatpush1.msra.mxu0 %v924
    %939 = vmatprep.subr.mxu0 0.0
    %940 = vmatpush1.msra.mxu0 %v925
    %941 = vmatprep.subr.mxu0 0.0
    %942 = vmatpush1.msra.mxu0 %v926
    %943 = vmatprep.subr.mxu0 0.0
    %944 = vmatpush1.msra.mxu0 %v927
    %945 = vmatprep.subr.mxu0 0.0
    %946 = vmatpush1.msra.mxu0 %v928
    %947 = vmatprep.subr.mxu0 0.0
    %948 = vmatpush1.msra.mxu0 %v929
    %949 = vmatprep.subr.mxu0 0.0
    %950 = vmatpush1.msra.mxu0 0.0
    %951 = vmatprep.subr.mxu0 0.0
    %952 = vmatpush1.msra.mxu0 0.0
    %953 = vmatprep.subr.mxu0 0.0
    %954 = vmatpush1.msra.mxu0 0.0
    %955 = vmatprep.subr.mxu0 0.0
    %956 = vmatpush1.msra.mxu0 0.0
    %957 = vmatprep.subr.mxu0 0.0
    %958 = vmatpush1.msra.mxu0 0.0
    %959 = vmatprep.subr.mxu0 0.0
    %960 = vmatpush1.msra.mxu0 0.0
    %961 = vmatprep.subr.mxu0 0.0
    %962 = vmatpush1.msra.mxu0 0.0
    %963 = vmatprep.subr.mxu0 0.0
    %964 = vmatpush1.msra.mxu0 0.0
    %965 = vmatprep.subr.mxu0 0.0
    %966 = vmatpush1.msra.mxu0 0.0
    %967 = vmatprep.subr.mxu0 0.0
    %968 = vmatpush1.msra.mxu0 0.0
    %969 = vmatprep.subr.mxu0 0.0
    %970 = vmatpush1.msra.mxu0 0.0
    %971 = vmatprep.subr.mxu0 0.0
    %972 = vmatpush1.msra.mxu0 0.0
    %973 = vmatprep.subr.mxu0 0.0
    %974 = vmatpush1.msra.mxu0 0.0
    %975 = vmatprep.subr.mxu0 0.0
    %976 = vmatpush1.msra.mxu0 0.0
    %977 = vmatprep.subr.mxu0 0.0
    %978 = vmatpush1.msra.mxu0 0.0
    %979 = vmatprep.subr.mxu0 0.0
    %980 = vmatpush1.msra.mxu0 0.0
    %981 = vmatprep.subr.mxu0 0.0
    %982 = vmatpush1.msra.mxu0 0.0
    %983 = vmatprep.subr.mxu0 0.0
    %984 = vmatpush1.msra.mxu0 0.0
    %985 = vmatprep.subr.mxu0 0.0
    %986 = vmatpush1.msra.mxu0 0.0
    %987 = vmatprep.subr.mxu0 0.0
    %988 = vmatpush1.msra.mxu0 0.0
    %989 = vmatprep.subr.mxu0 0.0
    %990 = vmatpush1.msra.mxu0 0.0
    %991 = vmatprep.subr.mxu0 0.0
    %992 = vmatpush1.msra.mxu0 0.0
    %993 = vmatprep.subr.mxu0 0.0
    %994 = vmatpush1.msra.mxu0 0.0
    %995 = vmatprep.subr.mxu0 0.0
    %996 = vmatpush1.msra.mxu0 0.0
    %997 = vmatprep.mubr.f32.mxu0 0.0
    %998 = vmatmul.mubr.f32.gmra.mrb[0].mxu0 %v931
    %v999 = vpop.f32.mrb[0].mxu0
    %v1000 = vadd.f32 0.0, %v999
    %v1001 = vpop.f32.mrb[0].mxu0
    %1002 = vdwg.mxu0
    %v1003 = vadd.f32 %v921, %v1000
    %v1004 = vld [vmem:[%s7 + $0x140] sm:$0xff]
    %v1005 = vld [vmem:[%s7 + $0x148] sm:$0xff]
    %v1006 = vld [vmem:[%s7 + $0x150] sm:$0xff]
    %v1007 = vld [vmem:[%s7 + $0x158] sm:$0xff]
    %v1008 = vld [vmem:[%s7 + $0x160] sm:$0xff]
    %v1009 = vld [vmem:[%s7 + $0x168] sm:$0xff]
    %v1010 = vld [vmem:[%s7 + $0x170] sm:$0xff]
    %v1011 = vld [vmem:[%s7 + $0x178] sm:$0xff]
    %v1012 = vrot.slane %v592, 2
    %v1013 = vsel %vm613, %v1012, 0
    %1015 = vmatprep.subr.mxu0 0.0
    %1016 = vmatpush1.msra.mxu0 %v1004
    %1017 = vmatprep.subr.mxu0 0.0
    %1018 = vmatpush1.msra.mxu0 %v1005
    %1019 = vmatprep.subr.mxu0 0.0
    %1020 = vmatpush1.msra.mxu0 %v1006
    %1021 = vmatprep.subr.mxu0 0.0
    %1022 = vmatpush1.msra.mxu0 %v1007
    %1023 = vmatprep.subr.mxu0 0.0
    %1024 = vmatpush1.msra.mxu0 %v1008
    %1025 = vmatprep.subr.mxu0 0.0
    %1026 = vmatpush1.msra.mxu0 %v1009
    %1027 = vmatprep.subr.mxu0 0.0
    %1028 = vmatpush1.msra.mxu0 %v1010
    %1029 = vmatprep.subr.mxu0 0.0
    %1030 = vmatpush1.msra.mxu0 %v1011
    %1031 = vmatprep.subr.mxu0 0.0
    %1032 = vmatpush1.msra.mxu0 0.0
    %1033 = vmatprep.subr.mxu0 0.0
    %1034 = vmatpush1.msra.mxu0 0.0
    %1035 = vmatprep.subr.mxu0 0.0
    %1036 = vmatpush1.msra.mxu0 0.0
    %1037 = vmatprep.subr.mxu0 0.0
    %1038 = vmatpush1.msra.mxu0 0.0
    %1039 = vmatprep.subr.mxu0 0.0
    %1040 = vmatpush1.msra.mxu0 0.0
    %1041 = vmatprep.subr.mxu0 0.0
    %1042 = vmatpush1.msra.mxu0 0.0
    %1043 = vmatprep.subr.mxu0 0.0
    %1044 = vmatpush1.msra.mxu0 0.0
    %1045 = vmatprep.subr.mxu0 0.0
    %1046 = vmatpush1.msra.mxu0 0.0
    %1047 = vmatprep.subr.mxu0 0.0
    %1048 = vmatpush1.msra.mxu0 0.0
    %1049 = vmatprep.subr.mxu0 0.0
    %1050 = vmatpush1.msra.mxu0 0.0
    %1051 = vmatprep.subr.mxu0 0.0
    %1052 = vmatpush1.msra.mxu0 0.0
    %1053 = vmatprep.subr.mxu0 0.0
    %1054 = vmatpush1.msra.mxu0 0.0
    %1055 = vmatprep.subr.mxu0 0.0
    %1056 = vmatpush1.msra.mxu0 0.0
    %1057 = vmatprep.subr.mxu0 0.0
    %1058 = vmatpush1.msra.mxu0 0.0
    %1059 = vmatprep.subr.mxu0 0.0
    %1060 = vmatpush1.msra.mxu0 0.0
    %1061 = vmatprep.subr.mxu0 0.0
    %1062 = vmatpush1.msra.mxu0 0.0
    %1063 = vmatprep.subr.mxu0 0.0
    %1064 = vmatpush1.msra.mxu0 0.0
    %1065 = vmatprep.subr.mxu0 0.0
    %1066 = vmatpush1.msra.mxu0 0.0
    %1067 = vmatprep.subr.mxu0 0.0
    %1068 = vmatpush1.msra.mxu0 0.0
    %1069 = vmatprep.subr.mxu0 0.0
    %1070 = vmatpush1.msra.mxu0 0.0
    %1071 = vmatprep.subr.mxu0 0.0
    %1072 = vmatpush1.msra.mxu0 0.0
    %1073 = vmatprep.subr.mxu0 0.0
    %1074 = vmatpush1.msra.mxu0 0.0
    %1075 = vmatprep.subr.mxu0 0.0
    %1076 = vmatpush1.msra.mxu0 0.0
    %1077 = vmatprep.subr.mxu0 0.0
    %1078 = vmatpush1.msra.mxu0 0.0
    %1079 = vmatprep.mubr.f32.mxu0 0.0
    %1080 = vmatmul.mubr.f32.gmra.mrb[0].mxu0 %v1013
    %v1081 = vpop.f32.mrb[0].mxu0
    %v1082 = vadd.f32 0.0, %v1081
    %v1083 = vpop.f32.mrb[0].mxu0
    %1084 = vdwg.mxu0
    %v1085 = vadd.f32 %v1003, %v1082
    %v1086 = vld [vmem:[%s7 + $0x180] sm:$0xff]
    %v1087 = vld [vmem:[%s7 + $0x188] sm:$0xff]
    %v1088 = vld [vmem:[%s7 + $0x190] sm:$0xff]
    %v1089 = vld [vmem:[%s7 + $0x198] sm:$0xff]
    %v1090 = vld [vmem:[%s7 + $0x1a0] sm:$0xff]
    %v1091 = vld [vmem:[%s7 + $0x1a8] sm:$0xff]
    %v1092 = vld [vmem:[%s7 + $0x1b0] sm:$0xff]
    %v1093 = vld [vmem:[%s7 + $0x1b8] sm:$0xff]
    %v1094 = vrot.slane %v592, 4
    %v1095 = vsel %vm613, %v1094, 0
    %1097 = vmatprep.subr.mxu0 0.0
    %1098 = vmatpush1.msra.mxu0 %v1086
    %1099 = vmatprep.subr.mxu0 0.0
    %1100 = vmatpush1.msra.mxu0 %v1087
    %1101 = vmatprep.subr.mxu0 0.0
    %1102 = vmatpush1.msra.mxu0 %v1088
    %1103 = vmatprep.subr.mxu0 0.0
    %1104 = vmatpush1.msra.mxu0 %v1089
    %1105 = vmatprep.subr.mxu0 0.0
    %1106 = vmatpush1.msra.mxu0 %v1090
    %1107 = vmatprep.subr.mxu0 0.0
    %1108 = vmatpush1.msra.mxu0 %v1091
    %1109 = vmatprep.subr.mxu0 0.0
    %1110 = vmatpush1.msra.mxu0 %v1092
    %1111 = vmatprep.subr.mxu0 0.0
    %1112 = vmatpush1.msra.mxu0 %v1093
    %1113 = vmatprep.subr.mxu0 0.0
    %1114 = vmatpush1.msra.mxu0 0.0
    %1115 = vmatprep.subr.mxu0 0.0
    %1116 = vmatpush1.msra.mxu0 0.0
    %1117 = vmatprep.subr.mxu0 0.0
    %1118 = vmatpush1.msra.mxu0 0.0
    %1119 = vmatprep.subr.mxu0 0.0
    %1120 = vmatpush1.msra.mxu0 0.0
    %1121 = vmatprep.subr.mxu0 0.0
    %1122 = vmatpush1.msra.mxu0 0.0
    %1123 = vmatprep.subr.mxu0 0.0
    %1124 = vmatpush1.msra.mxu0 0.0
    %1125 = vmatprep.subr.mxu0 0.0
    %1126 = vmatpush1.msra.mxu0 0.0
    %1127 = vmatprep.subr.mxu0 0.0
    %1128 = vmatpush1.msra.mxu0 0.0
    %1129 = vmatprep.subr.mxu0 0.0
    %1130 = vmatpush1.msra.mxu0 0.0
    %1131 = vmatprep.subr.mxu0 0.0
    %1132 = vmatpush1.msra.mxu0 0.0
    %1133 = vmatprep.subr.mxu0 0.0
    %1134 = vmatpush1.msra.mxu0 0.0
    %1135 = vmatprep.subr.mxu0 0.0
    %1136 = vmatpush1.msra.mxu0 0.0
    %1137 = vmatprep.subr.mxu0 0.0
    %1138 = vmatpush1.msra.mxu0 0.0
    %1139 = vmatprep.subr.mxu0 0.0
    %1140 = vmatpush1.msra.mxu0 0.0
    %1141 = vmatprep.subr.mxu0 0.0
    %1142 = vmatpush1.msra.mxu0 0.0
    %1143 = vmatprep.subr.mxu0 0.0
    %1144 = vmatpush1.msra.mxu0 0.0
    %1145 = vmatprep.subr.mxu0 0.0
    %1146 = vmatpush1.msra.mxu0 0.0
    %1147 = vmatprep.subr.mxu0 0.0
    %1148 = vmatpush1.msra.mxu0 0.0
    %1149 = vmatprep.subr.mxu0 0.0
    %1150 = vmatpush1.msra.mxu0 0.0
    %1151 = vmatprep.subr.mxu0 0.0
    %1152 = vmatpush1.msra.mxu0 0.0
    %1153 = vmatprep.subr.mxu0 0.0
    %1154 = vmatpush1.msra.mxu0 0.0
    %1155 = vmatprep.subr.mxu0 0.0
    %1156 = vmatpush1.msra.mxu0 0.0
    %1157 = vmatprep.subr.mxu0 0.0
    %1158 = vmatpush1.msra.mxu0 0.0
    %1159 = vmatprep.subr.mxu0 0.0
    %1160 = vmatpush1.msra.mxu0 0.0
    %1161 = vmatprep.mubr.f32.mxu0 0.0
    %1162 = vmatmul.mubr.f32.gmra.mrb[0].mxu0 %v1095
    %v1163 = vpop.f32.mrb[0].mxu0
    %v1164 = vadd.f32 0.0, %v1163
    %v1165 = vpop.f32.mrb[0].mxu0
    %1166 = vdwg.mxu0
    %v1167 = vadd.f32 %v1085, %v1164
    %v1168 = vld [vmem:[%s7 + $0x1c0] sm:$0xff]
    %v1169 = vld [vmem:[%s7 + $0x1c8] sm:$0xff]
    %v1170 = vld [vmem:[%s7 + $0x1d0] sm:$0xff]
    %v1171 = vld [vmem:[%s7 + $0x1d8] sm:$0xff]
    %v1172 = vld [vmem:[%s7 + $0x1e0] sm:$0xff]
    %v1173 = vld [vmem:[%s7 + $0x1e8] sm:$0xff]
    %v1174 = vld [vmem:[%s7 + $0x1f0] sm:$0xff]
    %v1175 = vld [vmem:[%s7 + $0x1f8] sm:$0xff]
    %v1176 = vrot.slane %v592, 6
    %v1177 = vsel %vm613, %v1176, 0
    %1179 = vmatprep.subr.mxu0 0.0
    %1180 = vmatpush1.msra.mxu0 %v1168
    %1181 = vmatprep.subr.mxu0 0.0
    %1182 = vmatpush1.msra.mxu0 %v1169
    %1183 = vmatprep.subr.mxu0 0.0
    %1184 = vmatpush1.msra.mxu0 %v1170
    %1185 = vmatprep.subr.mxu0 0.0
    %1186 = vmatpush1.msra.mxu0 %v1171
    %1187 = vmatprep.subr.mxu0 0.0
    %1188 = vmatpush1.msra.mxu0 %v1172
    %1189 = vmatprep.subr.mxu0 0.0
    %1190 = vmatpush1.msra.mxu0 %v1173
    %1191 = vmatprep.subr.mxu0 0.0
    %1192 = vmatpush1.msra.mxu0 %v1174
    %1193 = vmatprep.subr.mxu0 0.0
    %1194 = vmatpush1.msra.mxu0 %v1175
    %1195 = vmatprep.subr.mxu0 0.0
    %1196 = vmatpush1.msra.mxu0 0.0
    %1197 = vmatprep.subr.mxu0 0.0
    %1198 = vmatpush1.msra.mxu0 0.0
    %1199 = vmatprep.subr.mxu0 0.0
    %1200 = vmatpush1.msra.mxu0 0.0
    %1201 = vmatprep.subr.mxu0 0.0
    %1202 = vmatpush1.msra.mxu0 0.0
    %1203 = vmatprep.subr.mxu0 0.0
    %1204 = vmatpush1.msra.mxu0 0.0
    %1205 = vmatprep.subr.mxu0 0.0
    %1206 = vmatpush1.msra.mxu0 0.0
    %1207 = vmatprep.subr.mxu0 0.0
    %1208 = vmatpush1.msra.mxu0 0.0
    %1209 = vmatprep.subr.mxu0 0.0
    %1210 = vmatpush1.msra.mxu0 0.0
    %1211 = vmatprep.subr.mxu0 0.0
    %1212 = vmatpush1.msra.mxu0 0.0
    %1213 = vmatprep.subr.mxu0 0.0
    %1214 = vmatpush1.msra.mxu0 0.0
    %1215 = vmatprep.subr.mxu0 0.0
    %1216 = vmatpush1.msra.mxu0 0.0
    %1217 = vmatprep.subr.mxu0 0.0
    %1218 = vmatpush1.msra.mxu0 0.0
    %1219 = vmatprep.subr.mxu0 0.0
    %1220 = vmatpush1.msra.mxu0 0.0
    %1221 = vmatprep.subr.mxu0 0.0
    %1222 = vmatpush1.msra.mxu0 0.0
    %1223 = vmatprep.subr.mxu0 0.0
    %1224 = vmatpush1.msra.mxu0 0.0
    %1225 = vmatprep.subr.mxu0 0.0
    %1226 = vmatpush1.msra.mxu0 0.0
    %1227 = vmatprep.subr.mxu0 0.0
    %1228 = vmatpush1.msra.mxu0 0.0
    %1229 = vmatprep.subr.mxu0 0.0
    %1230 = vmatpush1.msra.mxu0 0.0
    %1231 = vmatprep.subr.mxu0 0.0
    %1232 = vmatpush1.msra.mxu0 0.0
    %1233 = vmatprep.subr.mxu0 0.0
    %1234 = vmatpush1.msra.mxu0 0.0
    %1235 = vmatprep.subr.mxu0 0.0
    %1236 = vmatpush1.msra.mxu0 0.0
    %1237 = vmatprep.subr.mxu0 0.0
    %1238 = vmatpush1.msra.mxu0 0.0
    %1239 = vmatprep.subr.mxu0 0.0
    %1240 = vmatpush1.msra.mxu0 0.0
    %1241 = vmatprep.subr.mxu0 0.0
    %1242 = vmatpush1.msra.mxu0 0.0
    %1243 = vmatprep.mubr.f32.mxu0 0.0
    %1244 = vmatmul.mubr.f32.gmra.mrb[0].mxu0 %v1177
    %v1245 = vpop.f32.mrb[0].mxu0
    %v1246 = vadd.f32 0.0, %v1245
    %v1247 = vpop.f32.mrb[0].mxu0
    %1248 = vdwg.mxu0
    %v1249 = vadd.f32 %v1167, %v1246
    %v1250 = vld [vmem:[%s7 + $0x200] sm:$0xff]
    %v1251 = vld [vmem:[%s7 + $0x208] sm:$0xff]
    %v1252 = vld [vmem:[%s7 + $0x210] sm:$0xff]
    %v1253 = vld [vmem:[%s7 + $0x218] sm:$0xff]
    %v1254 = vld [vmem:[%s7 + $0x220] sm:$0xff]
    %v1255 = vld [vmem:[%s7 + $0x228] sm:$0xff]
    %v1256 = vld [vmem:[%s7 + $0x230] sm:$0xff]
    %v1257 = vld [vmem:[%s7 + $0x238] sm:$0xff]
    %v1259 = vsel %vm613, %v593, 0
    %1261 = vmatprep.subr.mxu0 0.0
    %1262 = vmatpush1.msra.mxu0 %v1250
    %1263 = vmatprep.subr.mxu0 0.0
    %1264 = vmatpush1.msra.mxu0 %v1251
    %1265 = vmatprep.subr.mxu0 0.0
    %1266 = vmatpush1.msra.mxu0 %v1252
    %1267 = vmatprep.subr.mxu0 0.0
    %1268 = vmatpush1.msra.mxu0 %v1253
    %1269 = vmatprep.subr.mxu0 0.0
    %1270 = vmatpush1.msra.mxu0 %v1254
    %1271 = vmatprep.subr.mxu0 0.0
    %1272 = vmatpush1.msra.mxu0 %v1255
    %1273 = vmatprep.subr.mxu0 0.0
    %1274 = vmatpush1.msra.mxu0 %v1256
    %1275 = vmatprep.subr.mxu0 0.0
    %1276 = vmatpush1.msra.mxu0 %v1257
    %1277 = vmatprep.subr.mxu0 0.0
    %1278 = vmatpush1.msra.mxu0 0.0
    %1279 = vmatprep.subr.mxu0 0.0
    %1280 = vmatpush1.msra.mxu0 0.0
    %1281 = vmatprep.subr.mxu0 0.0
    %1282 = vmatpush1.msra.mxu0 0.0
    %1283 = vmatprep.subr.mxu0 0.0
    %1284 = vmatpush1.msra.mxu0 0.0
    %1285 = vmatprep.subr.mxu0 0.0
    %1286 = vmatpush1.msra.mxu0 0.0
    %1287 = vmatprep.subr.mxu0 0.0
    %1288 = vmatpush1.msra.mxu0 0.0
    %1289 = vmatprep.subr.mxu0 0.0
    %1290 = vmatpush1.msra.mxu0 0.0
    %1291 = vmatprep.subr.mxu0 0.0
    %1292 = vmatpush1.msra.mxu0 0.0
    %1293 = vmatprep.subr.mxu0 0.0
    %1294 = vmatpush1.msra.mxu0 0.0
    %1295 = vmatprep.subr.mxu0 0.0
    %1296 = vmatpush1.msra.mxu0 0.0
    %1297 = vmatprep.subr.mxu0 0.0
    %1298 = vmatpush1.msra.mxu0 0.0
    %1299 = vmatprep.subr.mxu0 0.0
    %1300 = vmatpush1.msra.mxu0 0.0
    %1301 = vmatprep.subr.mxu0 0.0
    %1302 = vmatpush1.msra.mxu0 0.0
    %1303 = vmatprep.subr.mxu0 0.0
    %1304 = vmatpush1.msra.mxu0 0.0
    %1305 = vmatprep.subr.mxu0 0.0
    %1306 = vmatpush1.msra.mxu0 0.0
    %1307 = vmatprep.subr.mxu0 0.0
    %1308 = vmatpush1.msra.mxu0 0.0
    %1309 = vmatprep.subr.mxu0 0.0
    %1310 = vmatpush1.msra.mxu0 0.0
    %1311 = vmatprep.subr.mxu0 0.0
    %1312 = vmatpush1.msra.mxu0 0.0
    %1313 = vmatprep.subr.mxu0 0.0
    %1314 = vmatpush1.msra.mxu0 0.0
    %1315 = vmatprep.subr.mxu0 0.0
    %1316 = vmatpush1.msra.mxu0 0.0
    %1317 = vmatprep.subr.mxu0 0.0
    %1318 = vmatpush1.msra.mxu0 0.0
    %1319 = vmatprep.subr.mxu0 0.0
    %1320 = vmatpush1.msra.mxu0 0.0
    %1321 = vmatprep.subr.mxu0 0.0
    %1322 = vmatpush1.msra.mxu0 0.0
    %1323 = vmatprep.subr.mxu0 0.0
    %1324 = vmatpush1.msra.mxu0 0.0
    %1325 = vmatprep.mubr.f32.mxu0 0.0
    %1326 = vmatmul.mubr.f32.gmra.mrb[0].mxu0 %v1259
    %v1327 = vpop.f32.mrb[0].mxu0
    %v1328 = vadd.f32 0.0, %v1327
    %v1329 = vpop.f32.mrb[0].mxu0
    %1330 = vdwg.mxu0
    %v1331 = vadd.f32 %v1249, %v1328
    %v1332 = vld [vmem:[%s7 + $0x240] sm:$0xff]
    %v1333 = vld [vmem:[%s7 + $0x248] sm:$0xff]
    %v1334 = vld [vmem:[%s7 + $0x250] sm:$0xff]
    %v1335 = vld [vmem:[%s7 + $0x258] sm:$0xff]
    %v1336 = vld [vmem:[%s7 + $0x260] sm:$0xff]
    %v1337 = vld [vmem:[%s7 + $0x268] sm:$0xff]
    %v1338 = vld [vmem:[%s7 + $0x270] sm:$0xff]
    %v1339 = vld [vmem:[%s7 + $0x278] sm:$0xff]
    %v1340 = vrot.slane %v593, 2
    %v1341 = vsel %vm613, %v1340, 0
    %1343 = vmatprep.subr.mxu0 0.0
    %1344 = vmatpush1.msra.mxu0 %v1332
    %1345 = vmatprep.subr.mxu0 0.0
    %1346 = vmatpush1.msra.mxu0 %v1333
    %1347 = vmatprep.subr.mxu0 0.0
    %1348 = vmatpush1.msra.mxu0 %v1334
    %1349 = vmatprep.subr.mxu0 0.0
    %1350 = vmatpush1.msra.mxu0 %v1335
    %1351 = vmatprep.subr.mxu0 0.0
    %1352 = vmatpush1.msra.mxu0 %v1336
    %1353 = vmatprep.subr.mxu0 0.0
    %1354 = vmatpush1.msra.mxu0 %v1337
    %1355 = vmatprep.subr.mxu0 0.0
    %1356 = vmatpush1.msra.mxu0 %v1338
    %1357 = vmatprep.subr.mxu0 0.0
    %1358 = vmatpush1.msra.mxu0 %v1339
    %1359 = vmatprep.subr.mxu0 0.0
    %1360 = vmatpush1.msra.mxu0 0.0
    %1361 = vmatprep.subr.mxu0 0.0
    %1362 = vmatpush1.msra.mxu0 0.0
    %1363 = vmatprep.subr.mxu0 0.0
    %1364 = vmatpush1.msra.mxu0 0.0
    %1365 = vmatprep.subr.mxu0 0.0
    %1366 = vmatpush1.msra.mxu0 0.0
    %1367 = vmatprep.subr.mxu0 0.0
    %1368 = vmatpush1.msra.mxu0 0.0
    %1369 = vmatprep.subr.mxu0 0.0
    %1370 = vmatpush1.msra.mxu0 0.0
    %1371 = vmatprep.subr.mxu0 0.0
    %1372 = vmatpush1.msra.mxu0 0.0
    %1373 = vmatprep.subr.mxu0 0.0
    %1374 = vmatpush1.msra.mxu0 0.0
    %1375 = vmatprep.subr.mxu0 0.0
    %1376 = vmatpush1.msra.mxu0 0.0
    %1377 = vmatprep.subr.mxu0 0.0
    %1378 = vmatpush1.msra.mxu0 0.0
    %1379 = vmatprep.subr.mxu0 0.0
    %1380 = vmatpush1.msra.mxu0 0.0
    %1381 = vmatprep.subr.mxu0 0.0
    %1382 = vmatpush1.msra.mxu0 0.0
    %1383 = vmatprep.subr.mxu0 0.0
    %1384 = vmatpush1.msra.mxu0 0.0
    %1385 = vmatprep.subr.mxu0 0.0
    %1386 = vmatpush1.msra.mxu0 0.0
    %1387 = vmatprep.subr.mxu0 0.0
    %1388 = vmatpush1.msra.mxu0 0.0
    %1389 = vmatprep.subr.mxu0 0.0
    %1390 = vmatpush1.msra.mxu0 0.0
    %1391 = vmatprep.subr.mxu0 0.0
    %1392 = vmatpush1.msra.mxu0 0.0
    %1393 = vmatprep.subr.mxu0 0.0
    %1394 = vmatpush1.msra.mxu0 0.0
    %1395 = vmatprep.subr.mxu0 0.0
    %1396 = vmatpush1.msra.mxu0 0.0
    %1397 = vmatprep.subr.mxu0 0.0
    %1398 = vmatpush1.msra.mxu0 0.0
    %1399 = vmatprep.subr.mxu0 0.0
    %1400 = vmatpush1.msra.mxu0 0.0
    %1401 = vmatprep.subr.mxu0 0.0
    %1402 = vmatpush1.msra.mxu0 0.0
    %1403 = vmatprep.subr.mxu0 0.0
    %1404 = vmatpush1.msra.mxu0 0.0
    %1405 = vmatprep.subr.mxu0 0.0
    %1406 = vmatpush1.msra.mxu0 0.0
    %1407 = vmatprep.mubr.f32.mxu0 0.0
    %1408 = vmatmul.mubr.f32.gmra.mrb[0].mxu0 %v1341
    %v1409 = vpop.f32.mrb[0].mxu0
    %v1410 = vadd.f32 0.0, %v1409
    %v1411 = vpop.f32.mrb[0].mxu0
    %1412 = vdwg.mxu0
    %v1413 = vadd.f32 %v1331, %v1410
    %v1414 = vld [vmem:[%s7 + $0x280] sm:$0xff]
    %v1415 = vld [vmem:[%s7 + $0x288] sm:$0xff]
    %v1416 = vld [vmem:[%s7 + $0x290] sm:$0xff]
    %v1417 = vld [vmem:[%s7 + $0x298] sm:$0xff]
    %v1418 = vld [vmem:[%s7 + $0x2a0] sm:$0xff]
    %v1419 = vld [vmem:[%s7 + $0x2a8] sm:$0xff]
    %v1420 = vld [vmem:[%s7 + $0x2b0] sm:$0xff]
    %v1421 = vld [vmem:[%s7 + $0x2b8] sm:$0xff]
    %v1422 = vrot.slane %v593, 4
    %v1423 = vsel %vm613, %v1422, 0
    %1425 = vmatprep.subr.mxu0 0.0
    %1426 = vmatpush1.msra.mxu0 %v1414
    %1427 = vmatprep.subr.mxu0 0.0
    %1428 = vmatpush1.msra.mxu0 %v1415
    %1429 = vmatprep.subr.mxu0 0.0
    %1430 = vmatpush1.msra.mxu0 %v1416
    %1431 = vmatprep.subr.mxu0 0.0
    %1432 = vmatpush1.msra.mxu0 %v1417
    %1433 = vmatprep.subr.mxu0 0.0
    %1434 = vmatpush1.msra.mxu0 %v1418
    %1435 = vmatprep.subr.mxu0 0.0
    %1436 = vmatpush1.msra.mxu0 %v1419
    %1437 = vmatprep.subr.mxu0 0.0
    %1438 = vmatpush1.msra.mxu0 %v1420
    %1439 = vmatprep.subr.mxu0 0.0
    %1440 = vmatpush1.msra.mxu0 %v1421
    %1441 = vmatprep.subr.mxu0 0.0
    %1442 = vmatpush1.msra.mxu0 0.0
    %1443 = vmatprep.subr.mxu0 0.0
    %1444 = vmatpush1.msra.mxu0 0.0
    %1445 = vmatprep.subr.mxu0 0.0
    %1446 = vmatpush1.msra.mxu0 0.0
    %1447 = vmatprep.subr.mxu0 0.0
    %1448 = vmatpush1.msra.mxu0 0.0
    %1449 = vmatprep.subr.mxu0 0.0
    %1450 = vmatpush1.msra.mxu0 0.0
    %1451 = vmatprep.subr.mxu0 0.0
    %1452 = vmatpush1.msra.mxu0 0.0
    %1453 = vmatprep.subr.mxu0 0.0
    %1454 = vmatpush1.msra.mxu0 0.0
    %1455 = vmatprep.subr.mxu0 0.0
    %1456 = vmatpush1.msra.mxu0 0.0
    %1457 = vmatprep.subr.mxu0 0.0
    %1458 = vmatpush1.msra.mxu0 0.0
    %1459 = vmatprep.subr.mxu0 0.0
    %1460 = vmatpush1.msra.mxu0 0.0
    %1461 = vmatprep.subr.mxu0 0.0
    %1462 = vmatpush1.msra.mxu0 0.0
    %1463 = vmatprep.subr.mxu0 0.0
    %1464 = vmatpush1.msra.mxu0 0.0
    %1465 = vmatprep.subr.mxu0 0.0
    %1466 = vmatpush1.msra.mxu0 0.0
    %1467 = vmatprep.subr.mxu0 0.0
    %1468 = vmatpush1.msra.mxu0 0.0
    %1469 = vmatprep.subr.mxu0 0.0
    %1470 = vmatpush1.msra.mxu0 0.0
    %1471 = vmatprep.subr.mxu0 0.0
    %1472 = vmatpush1.msra.mxu0 0.0
    %1473 = vmatprep.subr.mxu0 0.0
    %1474 = vmatpush1.msra.mxu0 0.0
    %1475 = vmatprep.subr.mxu0 0.0
    %1476 = vmatpush1.msra.mxu0 0.0
    %1477 = vmatprep.subr.mxu0 0.0
    %1478 = vmatpush1.msra.mxu0 0.0
    %1479 = vmatprep.subr.mxu0 0.0
    %1480 = vmatpush1.msra.mxu0 0.0
    %1481 = vmatprep.subr.mxu0 0.0
    %1482 = vmatpush1.msra.mxu0 0.0
    %1483 = vmatprep.subr.mxu0 0.0
    %1484 = vmatpush1.msra.mxu0 0.0
    %1485 = vmatprep.subr.mxu0 0.0
    %1486 = vmatpush1.msra.mxu0 0.0
    %1487 = vmatprep.subr.mxu0 0.0
    %1488 = vmatpush1.msra.mxu0 0.0
    %1489 = vmatprep.mubr.f32.mxu0 0.0
    %1490 = vmatmul.mubr.f32.gmra.mrb[0].mxu0 %v1423
    %v1491 = vpop.f32.mrb[0].mxu0
    %v1492 = vadd.f32 0.0, %v1491
    %v1493 = vpop.f32.mrb[0].mxu0
    %1494 = vdwg.mxu0
    %v1495 = vadd.f32 %v1413, %v1492
    %v1496 = vld [vmem:[%s7 + $0x2c0] sm:$0xff]
    %v1497 = vld [vmem:[%s7 + $0x2c8] sm:$0xff]
    %v1498 = vld [vmem:[%s7 + $0x2d0] sm:$0xff]
    %v1499 = vld [vmem:[%s7 + $0x2d8] sm:$0xff]
    %v1500 = vld [vmem:[%s7 + $0x2e0] sm:$0xff]
    %v1501 = vld [vmem:[%s7 + $0x2e8] sm:$0xff]
    %v1502 = vld [vmem:[%s7 + $0x2f0] sm:$0xff]
    %v1503 = vld [vmem:[%s7 + $0x2f8] sm:$0xff]
    %v1504 = vrot.slane %v593, 6
    %v1505 = vsel %vm613, %v1504, 0
    %1507 = vmatprep.subr.mxu0 0.0
    %1508 = vmatpush1.msra.mxu0 %v1496
    %1509 = vmatprep.subr.mxu0 0.0
    %1510 = vmatpush1.msra.mxu0 %v1497
    %1511 = vmatprep.subr.mxu0 0.0
    %1512 = vmatpush1.msra.mxu0 %v1498
    %1513 = vmatprep.subr.mxu0 0.0
    %1514 = vmatpush1.msra.mxu0 %v1499
    %1515 = vmatprep.subr.mxu0 0.0
    %1516 = vmatpush1.msra.mxu0 %v1500
    %1517 = vmatprep.subr.mxu0 0.0
    %1518 = vmatpush1.msra.mxu0 %v1501
    %1519 = vmatprep.subr.mxu0 0.0
    %1520 = vmatpush1.msra.mxu0 %v1502
    %1521 = vmatprep.subr.mxu0 0.0
    %1522 = vmatpush1.msra.mxu0 %v1503
    %1523 = vmatprep.subr.mxu0 0.0
    %1524 = vmatpush1.msra.mxu0 0.0
    %1525 = vmatprep.subr.mxu0 0.0
    %1526 = vmatpush1.msra.mxu0 0.0
    %1527 = vmatprep.subr.mxu0 0.0
    %1528 = vmatpush1.msra.mxu0 0.0
    %1529 = vmatprep.subr.mxu0 0.0
    %1530 = vmatpush1.msra.mxu0 0.0
    %1531 = vmatprep.subr.mxu0 0.0
    %1532 = vmatpush1.msra.mxu0 0.0
    %1533 = vmatprep.subr.mxu0 0.0
    %1534 = vmatpush1.msra.mxu0 0.0
    %1535 = vmatprep.subr.mxu0 0.0
    %1536 = vmatpush1.msra.mxu0 0.0
    %1537 = vmatprep.subr.mxu0 0.0
    %1538 = vmatpush1.msra.mxu0 0.0
    %1539 = vmatprep.subr.mxu0 0.0
    %1540 = vmatpush1.msra.mxu0 0.0
    %1541 = vmatprep.subr.mxu0 0.0
    %1542 = vmatpush1.msra.mxu0 0.0
    %1543 = vmatprep.subr.mxu0 0.0
    %1544 = vmatpush1.msra.mxu0 0.0
    %1545 = vmatprep.subr.mxu0 0.0
    %1546 = vmatpush1.msra.mxu0 0.0
    %1547 = vmatprep.subr.mxu0 0.0
    %1548 = vmatpush1.msra.mxu0 0.0
    %1549 = vmatprep.subr.mxu0 0.0
    %1550 = vmatpush1.msra.mxu0 0.0
    %1551 = vmatprep.subr.mxu0 0.0
    %1552 = vmatpush1.msra.mxu0 0.0
    %1553 = vmatprep.subr.mxu0 0.0
    %1554 = vmatpush1.msra.mxu0 0.0
    %1555 = vmatprep.subr.mxu0 0.0
    %1556 = vmatpush1.msra.mxu0 0.0
    %1557 = vmatprep.subr.mxu0 0.0
    %1558 = vmatpush1.msra.mxu0 0.0
    %1559 = vmatprep.subr.mxu0 0.0
    %1560 = vmatpush1.msra.mxu0 0.0
    %1561 = vmatprep.subr.mxu0 0.0
    %1562 = vmatpush1.msra.mxu0 0.0
    %1563 = vmatprep.subr.mxu0 0.0
    %1564 = vmatpush1.msra.mxu0 0.0
    %1565 = vmatprep.subr.mxu0 0.0
    %1566 = vmatpush1.msra.mxu0 0.0
    %1567 = vmatprep.subr.mxu0 0.0
    %1568 = vmatpush1.msra.mxu0 0.0
    %1569 = vmatprep.subr.mxu0 0.0
    %1570 = vmatpush1.msra.mxu0 0.0
    %1571 = vmatprep.mubr.f32.mxu0 0.0
    %1572 = vmatmul.mubr.f32.gmra.mrb[0].mxu0 %v1505
    %v1573 = vpop.f32.mrb[0].mxu0
    %v1574 = vadd.f32 0.0, %v1573
    %v1575 = vpop.f32.mrb[0].mxu0
    %1576 = vdwg.mxu0
    %v1577 = vadd.f32 %v1495, %v1574
    %v1578 = vld [vmem:[%s7 + $0x300] sm:$0xff]
    %v1579 = vld [vmem:[%s7 + $0x308] sm:$0xff]
    %v1580 = vld [vmem:[%s7 + $0x310] sm:$0xff]
    %v1581 = vld [vmem:[%s7 + $0x318] sm:$0xff]
    %v1582 = vld [vmem:[%s7 + $0x320] sm:$0xff]
    %v1583 = vld [vmem:[%s7 + $0x328] sm:$0xff]
    %v1584 = vld [vmem:[%s7 + $0x330] sm:$0xff]
    %v1585 = vld [vmem:[%s7 + $0x338] sm:$0xff]
    %v1587 = vsel %vm613, %v594, 0
    %1589 = vmatprep.subr.mxu0 0.0
    %1590 = vmatpush1.msra.mxu0 %v1578
    %1591 = vmatprep.subr.mxu0 0.0
    %1592 = vmatpush1.msra.mxu0 %v1579
    %1593 = vmatprep.subr.mxu0 0.0
    %1594 = vmatpush1.msra.mxu0 %v1580
    %1595 = vmatprep.subr.mxu0 0.0
    %1596 = vmatpush1.msra.mxu0 %v1581
    %1597 = vmatprep.subr.mxu0 0.0
    %1598 = vmatpush1.msra.mxu0 %v1582
    %1599 = vmatprep.subr.mxu0 0.0
    %1600 = vmatpush1.msra.mxu0 %v1583
    %1601 = vmatprep.subr.mxu0 0.0
    %1602 = vmatpush1.msra.mxu0 %v1584
    %1603 = vmatprep.subr.mxu0 0.0
    %1604 = vmatpush1.msra.mxu0 %v1585
    %1605 = vmatprep.subr.mxu0 0.0
    %1606 = vmatpush1.msra.mxu0 0.0
    %1607 = vmatprep.subr.mxu0 0.0
    %1608 = vmatpush1.msra.mxu0 0.0
    %1609 = vmatprep.subr.mxu0 0.0
    %1610 = vmatpush1.msra.mxu0 0.0
    %1611 = vmatprep.subr.mxu0 0.0
    %1612 = vmatpush1.msra.mxu0 0.0
    %1613 = vmatprep.subr.mxu0 0.0
    %1614 = vmatpush1.msra.mxu0 0.0
    %1615 = vmatprep.subr.mxu0 0.0
    %1616 = vmatpush1.msra.mxu0 0.0
    %1617 = vmatprep.subr.mxu0 0.0
    %1618 = vmatpush1.msra.mxu0 0.0
    %1619 = vmatprep.subr.mxu0 0.0
    %1620 = vmatpush1.msra.mxu0 0.0
    %1621 = vmatprep.subr.mxu0 0.0
    %1622 = vmatpush1.msra.mxu0 0.0
    %1623 = vmatprep.subr.mxu0 0.0
    %1624 = vmatpush1.msra.mxu0 0.0
    %1625 = vmatprep.subr.mxu0 0.0
    %1626 = vmatpush1.msra.mxu0 0.0
    %1627 = vmatprep.subr.mxu0 0.0
    %1628 = vmatpush1.msra.mxu0 0.0
    %1629 = vmatprep.subr.mxu0 0.0
    %1630 = vmatpush1.msra.mxu0 0.0
    %1631 = vmatprep.subr.mxu0 0.0
    %1632 = vmatpush1.msra.mxu0 0.0
    %1633 = vmatprep.subr.mxu0 0.0
    %1634 = vmatpush1.msra.mxu0 0.0
    %1635 = vmatprep.subr.mxu0 0.0
    %1636 = vmatpush1.msra.mxu0 0.0
    %1637 = vmatprep.subr.mxu0 0.0
    %1638 = vmatpush1.msra.mxu0 0.0
    %1639 = vmatprep.subr.mxu0 0.0
    %1640 = vmatpush1.msra.mxu0 0.0
    %1641 = vmatprep.subr.mxu0 0.0
    %1642 = vmatpush1.msra.mxu0 0.0
    %1643 = vmatprep.subr.mxu0 0.0
    %1644 = vmatpush1.msra.mxu0 0.0
    %1645 = vmatprep.subr.mxu0 0.0
    %1646 = vmatpush1.msra.mxu0 0.0
    %1647 = vmatprep.subr.mxu0 0.0
    %1648 = vmatpush1.msra.mxu0 0.0
    %1649 = vmatprep.subr.mxu0 0.0
    %1650 = vmatpush1.msra.mxu0 0.0
    %1651 = vmatprep.subr.mxu0 0.0
    %1652 = vmatpush1.msra.mxu0 0.0
    %1653 = vmatprep.mubr.f32.mxu0 0.0
    %1654 = vmatmul.mubr.f32.gmra.mrb[0].mxu0 %v1587
    %v1655 = vpop.f32.mrb[0].mxu0
    %v1656 = vadd.f32 0.0, %v1655
    %v1657 = vpop.f32.mrb[0].mxu0
    %1658 = vdwg.mxu0
    %v1659 = vadd.f32 %v1577, %v1656
    %v1660 = vld [vmem:[%s7 + $0x340] sm:$0xff]
    %v1661 = vld [vmem:[%s7 + $0x348] sm:$0xff]
    %v1662 = vld [vmem:[%s7 + $0x350] sm:$0xff]
    %v1663 = vld [vmem:[%s7 + $0x358] sm:$0xff]
    %v1664 = vld [vmem:[%s7 + $0x360] sm:$0xff]
    %v1665 = vld [vmem:[%s7 + $0x368] sm:$0xff]
    %v1666 = vld [vmem:[%s7 + $0x370] sm:$0xff]
    %v1667 = vld [vmem:[%s7 + $0x378] sm:$0xff]
    %v1668 = vrot.slane %v594, 2
    %v1669 = vsel %vm613, %v1668, 0
    %1671 = vmatprep.subr.mxu0 0.0
    %1672 = vmatpush1.msra.mxu0 %v1660
    %1673 = vmatprep.subr.mxu0 0.0
    %1674 = vmatpush1.msra.mxu0 %v1661
    %1675 = vmatprep.subr.mxu0 0.0
    %1676 = vmatpush1.msra.mxu0 %v1662
    %1677 = vmatprep.subr.mxu0 0.0
    %1678 = vmatpush1.msra.mxu0 %v1663
    %1679 = vmatprep.subr.mxu0 0.0
    %1680 = vmatpush1.msra.mxu0 %v1664
    %1681 = vmatprep.subr.mxu0 0.0
    %1682 = vmatpush1.msra.mxu0 %v1665
    %1683 = vmatprep.subr.mxu0 0.0
    %1684 = vmatpush1.msra.mxu0 %v1666
    %1685 = vmatprep.subr.mxu0 0.0
    %1686 = vmatpush1.msra.mxu0 %v1667
    %1687 = vmatprep.subr.mxu0 0.0
    %1688 = vmatpush1.msra.mxu0 0.0
    %1689 = vmatprep.subr.mxu0 0.0
    %1690 = vmatpush1.msra.mxu0 0.0
    %1691 = vmatprep.subr.mxu0 0.0
    %1692 = vmatpush1.msra.mxu0 0.0
    %1693 = vmatprep.subr.mxu0 0.0
    %1694 = vmatpush1.msra.mxu0 0.0
    %1695 = vmatprep.subr.mxu0 0.0
    %1696 = vmatpush1.msra.mxu0 0.0
    %1697 = vmatprep.subr.mxu0 0.0
    %1698 = vmatpush1.msra.mxu0 0.0
    %1699 = vmatprep.subr.mxu0 0.0
    %1700 = vmatpush1.msra.mxu0 0.0
    %1701 = vmatprep.subr.mxu0 0.0
    %1702 = vmatpush1.msra.mxu0 0.0
    %1703 = vmatprep.subr.mxu0 0.0
    %1704 = vmatpush1.msra.mxu0 0.0
    %1705 = vmatprep.subr.mxu0 0.0
    %1706 = vmatpush1.msra.mxu0 0.0
    %1707 = vmatprep.subr.mxu0 0.0
    %1708 = vmatpush1.msra.mxu0 0.0
    %1709 = vmatprep.subr.mxu0 0.0
    %1710 = vmatpush1.msra.mxu0 0.0
    %1711 = vmatprep.subr.mxu0 0.0
    %1712 = vmatpush1.msra.mxu0 0.0
    %1713 = vmatprep.subr.mxu0 0.0
    %1714 = vmatpush1.msra.mxu0 0.0
    %1715 = vmatprep.subr.mxu0 0.0
    %1716 = vmatpush1.msra.mxu0 0.0
    %1717 = vmatprep.subr.mxu0 0.0
    %1718 = vmatpush1.msra.mxu0 0.0
    %1719 = vmatprep.subr.mxu0 0.0
    %1720 = vmatpush1.msra.mxu0 0.0
    %1721 = vmatprep.subr.mxu0 0.0
    %1722 = vmatpush1.msra.mxu0 0.0
    %1723 = vmatprep.subr.mxu0 0.0
    %1724 = vmatpush1.msra.mxu0 0.0
    %1725 = vmatprep.subr.mxu0 0.0
    %1726 = vmatpush1.msra.mxu0 0.0
    %1727 = vmatprep.subr.mxu0 0.0
    %1728 = vmatpush1.msra.mxu0 0.0
    %1729 = vmatprep.subr.mxu0 0.0
    %1730 = vmatpush1.msra.mxu0 0.0
    %1731 = vmatprep.subr.mxu0 0.0
    %1732 = vmatpush1.msra.mxu0 0.0
    %1733 = vmatprep.subr.mxu0 0.0
    %1734 = vmatpush1.msra.mxu0 0.0
    %1735 = vmatprep.mubr.f32.mxu0 0.0
    %1736 = vmatmul.mubr.f32.gmra.mrb[0].mxu0 %v1669
    %v1737 = vpop.f32.mrb[0].mxu0
    %v1738 = vadd.f32 0.0, %v1737
    %v1739 = vpop.f32.mrb[0].mxu0
    %1740 = vdwg.mxu0
    %v1741 = vadd.f32 %v1659, %v1738
    %v1742 = vld [vmem:[%s7 + $0x380] sm:$0xff]
    %v1743 = vld [vmem:[%s7 + $0x388] sm:$0xff]
    %v1744 = vld [vmem:[%s7 + $0x390] sm:$0xff]
    %v1745 = vld [vmem:[%s7 + $0x398] sm:$0xff]
    %v1746 = vld [vmem:[%s7 + $0x3a0] sm:$0xff]
    %v1747 = vld [vmem:[%s7 + $0x3a8] sm:$0xff]
    %v1748 = vld [vmem:[%s7 + $0x3b0] sm:$0xff]
    %v1749 = vld [vmem:[%s7 + $0x3b8] sm:$0xff]
    %v1750 = vrot.slane %v594, 4
    %v1751 = vsel %vm613, %v1750, 0
    %1753 = vmatprep.subr.mxu0 0.0
    %1754 = vmatpush1.msra.mxu0 %v1742
    %1755 = vmatprep.subr.mxu0 0.0
    %1756 = vmatpush1.msra.mxu0 %v1743
    %1757 = vmatprep.subr.mxu0 0.0
    %1758 = vmatpush1.msra.mxu0 %v1744
    %1759 = vmatprep.subr.mxu0 0.0
    %1760 = vmatpush1.msra.mxu0 %v1745
    %1761 = vmatprep.subr.mxu0 0.0
    %1762 = vmatpush1.msra.mxu0 %v1746
    %1763 = vmatprep.subr.mxu0 0.0
    %1764 = vmatpush1.msra.mxu0 %v1747
    %1765 = vmatprep.subr.mxu0 0.0
    %1766 = vmatpush1.msra.mxu0 %v1748
    %1767 = vmatprep.subr.mxu0 0.0
    %1768 = vmatpush1.msra.mxu0 %v1749
    %1769 = vmatprep.subr.mxu0 0.0
    %1770 = vmatpush1.msra.mxu0 0.0
    %1771 = vmatprep.subr.mxu0 0.0
    %1772 = vmatpush1.msra.mxu0 0.0
    %1773 = vmatprep.subr.mxu0 0.0
    %1774 = vmatpush1.msra.mxu0 0.0
    %1775 = vmatprep.subr.mxu0 0.0
    %1776 = vmatpush1.msra.mxu0 0.0
    %1777 = vmatprep.subr.mxu0 0.0
    %1778 = vmatpush1.msra.mxu0 0.0
    %1779 = vmatprep.subr.mxu0 0.0
    %1780 = vmatpush1.msra.mxu0 0.0
    %1781 = vmatprep.subr.mxu0 0.0
    %1782 = vmatpush1.msra.mxu0 0.0
    %1783 = vmatprep.subr.mxu0 0.0
    %1784 = vmatpush1.msra.mxu0 0.0
    %1785 = vmatprep.subr.mxu0 0.0
    %1786 = vmatpush1.msra.mxu0 0.0
    %1787 = vmatprep.subr.mxu0 0.0
    %1788 = vmatpush1.msra.mxu0 0.0
    %1789 = vmatprep.subr.mxu0 0.0
    %1790 = vmatpush1.msra.mxu0 0.0
    %1791 = vmatprep.subr.mxu0 0.0
    %1792 = vmatpush1.msra.mxu0 0.0
    %1793 = vmatprep.subr.mxu0 0.0
    %1794 = vmatpush1.msra.mxu0 0.0
    %1795 = vmatprep.subr.mxu0 0.0
    %1796 = vmatpush1.msra.mxu0 0.0
    %1797 = vmatprep.subr.mxu0 0.0
    %1798 = vmatpush1.msra.mxu0 0.0
    %1799 = vmatprep.subr.mxu0 0.0
    %1800 = vmatpush1.msra.mxu0 0.0
    %1801 = vmatprep.subr.mxu0 0.0
    %1802 = vmatpush1.msra.mxu0 0.0
    %1803 = vmatprep.subr.mxu0 0.0
    %1804 = vmatpush1.msra.mxu0 0.0
    %1805 = vmatprep.subr.mxu0 0.0
    %1806 = vmatpush1.msra.mxu0 0.0
    %1807 = vmatprep.subr.mxu0 0.0
    %1808 = vmatpush1.msra.mxu0 0.0
    %1809 = vmatprep.subr.mxu0 0.0
    %1810 = vmatpush1.msra.mxu0 0.0
    %1811 = vmatprep.subr.mxu0 0.0
    %1812 = vmatpush1.msra.mxu0 0.0
    %1813 = vmatprep.subr.mxu0 0.0
    %1814 = vmatpush1.msra.mxu0 0.0
    %1815 = vmatprep.subr.mxu0 0.0
    %1816 = vmatpush1.msra.mxu0 0.0
    %1817 = vmatprep.mubr.f32.mxu0 0.0
    %1818 = vmatmul.mubr.f32.gmra.mrb[0].mxu0 %v1751
    %v1819 = vpop.f32.mrb[0].mxu0
    %v1820 = vadd.f32 0.0, %v1819
    %v1821 = vpop.f32.mrb[0].mxu0
    %1822 = vdwg.mxu0
    %v1823 = vadd.f32 %v1741, %v1820
    %v1824 = vld [vmem:[%s7 + $0x3c0] sm:$0xff]
    %v1825 = vld [vmem:[%s7 + $0x3c8] sm:$0xff]
    %v1826 = vld [vmem:[%s7 + $0x3d0] sm:$0xff]
    %v1827 = vld [vmem:[%s7 + $0x3d8] sm:$0xff]
    %v1828 = vld [vmem:[%s7 + $0x3e0] sm:$0xff]
    %v1829 = vld [vmem:[%s7 + $0x3e8] sm:$0xff]
    %v1830 = vld [vmem:[%s7 + $0x3f0] sm:$0xff]
    %v1831 = vld [vmem:[%s7 + $0x3f8] sm:$0xff]
    %v1832 = vrot.slane %v594, 6
    %v1833 = vsel %vm613, %v1832, 0
    %1835 = vmatprep.subr.mxu0 0.0
    %1836 = vmatpush1.msra.mxu0 %v1824
    %1837 = vmatprep.subr.mxu0 0.0
    %1838 = vmatpush1.msra.mxu0 %v1825
    %1839 = vmatprep.subr.mxu0 0.0
    %1840 = vmatpush1.msra.mxu0 %v1826
    %1841 = vmatprep.subr.mxu0 0.0
    %1842 = vmatpush1.msra.mxu0 %v1827
    %1843 = vmatprep.subr.mxu0 0.0
    %1844 = vmatpush1.msra.mxu0 %v1828
    %1845 = vmatprep.subr.mxu0 0.0
    %1846 = vmatpush1.msra.mxu0 %v1829
    %1847 = vmatprep.subr.mxu0 0.0
    %1848 = vmatpush1.msra.mxu0 %v1830
    %1849 = vmatprep.subr.mxu0 0.0
    %1850 = vmatpush1.msra.mxu0 %v1831
    %1851 = vmatprep.subr.mxu0 0.0
    %1852 = vmatpush1.msra.mxu0 0.0
    %1853 = vmatprep.subr.mxu0 0.0
    %1854 = vmatpush1.msra.mxu0 0.0
    %1855 = vmatprep.subr.mxu0 0.0
    %1856 = vmatpush1.msra.mxu0 0.0
    %1857 = vmatprep.subr.mxu0 0.0
    %1858 = vmatpush1.msra.mxu0 0.0
    %1859 = vmatprep.subr.mxu0 0.0
    %1860 = vmatpush1.msra.mxu0 0.0
    %1861 = vmatprep.subr.mxu0 0.0
    %1862 = vmatpush1.msra.mxu0 0.0
    %1863 = vmatprep.subr.mxu0 0.0
    %1864 = vmatpush1.msra.mxu0 0.0
    %1865 = vmatprep.subr.mxu0 0.0
    %1866 = vmatpush1.msra.mxu0 0.0
    %1867 = vmatprep.subr.mxu0 0.0
    %1868 = vmatpush1.msra.mxu0 0.0
    %1869 = vmatprep.subr.mxu0 0.0
    %1870 = vmatpush1.msra.mxu0 0.0
    %1871 = vmatprep.subr.mxu0 0.0
    %1872 = vmatpush1.msra.mxu0 0.0
    %1873 = vmatprep.subr.mxu0 0.0
    %1874 = vmatpush1.msra.mxu0 0.0
    %1875 = vmatprep.subr.mxu0 0.0
    %1876 = vmatpush1.msra.mxu0 0.0
    %1877 = vmatprep.subr.mxu0 0.0
    %1878 = vmatpush1.msra.mxu0 0.0
    %1879 = vmatprep.subr.mxu0 0.0
    %1880 = vmatpush1.msra.mxu0 0.0
    %1881 = vmatprep.subr.mxu0 0.0
    %1882 = vmatpush1.msra.mxu0 0.0
    %1883 = vmatprep.subr.mxu0 0.0
    %1884 = vmatpush1.msra.mxu0 0.0
    %1885 = vmatprep.subr.mxu0 0.0
    %1886 = vmatpush1.msra.mxu0 0.0
    %1887 = vmatprep.subr.mxu0 0.0
    %1888 = vmatpush1.msra.mxu0 0.0
    %1889 = vmatprep.subr.mxu0 0.0
    %1890 = vmatpush1.msra.mxu0 0.0
    %1891 = vmatprep.subr.mxu0 0.0
    %1892 = vmatpush1.msra.mxu0 0.0
    %1893 = vmatprep.subr.mxu0 0.0
    %1894 = vmatpush1.msra.mxu0 0.0
    %1895 = vmatprep.subr.mxu0 0.0
    %1896 = vmatpush1.msra.mxu0 0.0
    %1897 = vmatprep.subr.mxu0 0.0
    %1898 = vmatpush1.msra.mxu0 0.0
    %1899 = vmatprep.mubr.f32.mxu0 0.0
    %1900 = vmatmul.mubr.f32.gmra.mrb[0].mxu0 %v1833
    %v1901 = vpop.f32.mrb[0].mxu0
    %v1902 = vadd.f32 0.0, %v1901
    %v1903 = vpop.f32.mrb[0].mxu0
    %1904 = vdwg.mxu0
    %v1905 = vadd.f32 %v1823, %v1902
    %v1906 = vld [vmem:[%s8] sm:$0x1]
    %v1908 = vlaneseq
    %v1909 = vshrl.u32 %v1908, 7
    %v1910 = vsub.s32 0, %v1909
    %v1911 = vrot.slane %v1906, %v1910
    %v1913 = vadd.f32 %v1905, %v1911
    %v1914 = vmax.f32 %v1913, 0.0
    %v1915 = vld [vmem:[%s9] sm:$0xff]
    %v1916 = vld [vmem:[%s9 + $0x8] sm:$0xff]
    %v1917 = vld [vmem:[%s9 + $0x10] sm:$0xff]
    %v1918 = vld [vmem:[%s9 + $0x18] sm:$0xff]
    %v1919 = vld [vmem:[%s9 + $0x20] sm:$0xff]
    %v1920 = vld [vmem:[%s9 + $0x28] sm:$0xff]
    %v1921 = vld [vmem:[%s9 + $0x30] sm:$0xff]
    %v1922 = vld [vmem:[%s9 + $0x38] sm:$0xff]
    %v1923 = vld [vmem:[%s10] sm:$0x1]
    %v1925 = vlaneseq
    %v1926 = vshrl.u32 %v1925, 7
    %v1927 = vsub.s32 0, %v1926
    %v1928 = vrot.slane %v1923, %v1927
    %v1931 = vsel %vm613, %v1914, 0
    %1933 = vmatprep.subr.mxu0 0.0
    %1934 = vmatpush1.msra.mxu0 %v1915
    %1935 = vmatprep.subr.mxu0 0.0
    %1936 = vmatpush1.msra.mxu0 %v1916
    %1937 = vmatprep.subr.mxu0 0.0
    %1938 = vmatpush1.msra.mxu0 %v1917
    %1939 = vmatprep.subr.mxu0 0.0
    %1940 = vmatpush1.msra.mxu0 %v1918
    %1941 = vmatprep.subr.mxu0 0.0
    %1942 = vmatpush1.msra.mxu0 %v1919
    %1943 = vmatprep.subr.mxu0 0.0
    %1944 = vmatpush1.msra.mxu0 %v1920
    %1945 = vmatprep.subr.mxu0 0.0
    %1946 = vmatpush1.msra.mxu0 %v1921
    %1947 = vmatprep.subr.mxu0 0.0
    %1948 = vmatpush1.msra.mxu0 %v1922
    %1949 = vmatprep.subr.mxu0 0.0
    %1950 = vmatpush1.msra.mxu0 0.0
    %1951 = vmatprep.subr.mxu0 0.0
    %1952 = vmatpush1.msra.mxu0 0.0
    %1953 = vmatprep.subr.mxu0 0.0
    %1954 = vmatpush1.msra.mxu0 0.0
    %1955 = vmatprep.subr.mxu0 0.0
    %1956 = vmatpush1.msra.mxu0 0.0
    %1957 = vmatprep.subr.mxu0 0.0
    %1958 = vmatpush1.msra.mxu0 0.0
    %1959 = vmatprep.subr.mxu0 0.0
    %1960 = vmatpush1.msra.mxu0 0.0
    %1961 = vmatprep.subr.mxu0 0.0
    %1962 = vmatpush1.msra.mxu0 0.0
    %1963 = vmatprep.subr.mxu0 0.0
    %1964 = vmatpush1.msra.mxu0 0.0
    %1965 = vmatprep.subr.mxu0 0.0
    %1966 = vmatpush1.msra.mxu0 0.0
    %1967 = vmatprep.subr.mxu0 0.0
    %1968 = vmatpush1.msra.mxu0 0.0
    %1969 = vmatprep.subr.mxu0 0.0
    %1970 = vmatpush1.msra.mxu0 0.0
    %1971 = vmatprep.subr.mxu0 0.0
    %1972 = vmatpush1.msra.mxu0 0.0
    %1973 = vmatprep.subr.mxu0 0.0
    %1974 = vmatpush1.msra.mxu0 0.0
    %1975 = vmatprep.subr.mxu0 0.0
    %1976 = vmatpush1.msra.mxu0 0.0
    %1977 = vmatprep.subr.mxu0 0.0
    %1978 = vmatpush1.msra.mxu0 0.0
    %1979 = vmatprep.subr.mxu0 0.0
    %1980 = vmatpush1.msra.mxu0 0.0
    %1981 = vmatprep.subr.mxu0 0.0
    %1982 = vmatpush1.msra.mxu0 0.0
    %1983 = vmatprep.subr.mxu0 0.0
    %1984 = vmatpush1.msra.mxu0 0.0
    %1985 = vmatprep.subr.mxu0 0.0
    %1986 = vmatpush1.msra.mxu0 0.0
    %1987 = vmatprep.subr.mxu0 0.0
    %1988 = vmatpush1.msra.mxu0 0.0
    %1989 = vmatprep.subr.mxu0 0.0
    %1990 = vmatpush1.msra.mxu0 0.0
    %1991 = vmatprep.subr.mxu0 0.0
    %1992 = vmatpush1.msra.mxu0 0.0
    %1993 = vmatprep.subr.mxu0 0.0
    %1994 = vmatpush1.msra.mxu0 0.0
    %1995 = vmatprep.subr.mxu0 0.0
    %1996 = vmatpush1.msra.mxu0 0.0
    %1997 = vmatprep.mubr.f32.mxu0 0.0
    %1998 = vmatmul.mubr.f32.gmra.mrb[0].mxu0 %v1931
    %v1999 = vpop.f32.mrb[0].mxu0
    %v2000 = vadd.f32 %v1928, %v1999
    %v2001 = vpop.f32.mrb[0].mxu0
    %2002 = vdwg.mxu0
    %vm2003 = vcmask 17408
    %2004 = vst.msk [vmem:[#allocation4] sm:$0x3] %vm2003, %v2000
    // Predicated region
    $region46: #{classification_cnn_forward.1} parent=1 // pred_check
      _
    $region47: #{classification_cnn_forward.1} parent=1 // pred_check_branch
      %2006 = sbr.rel (0) target = $region49
    $region48: #{classification_cnn_forward.1} parent=1 // pred_region
      %s2008 = ssub.s32 32, 32
      %2009 = vsyncadd [#allocation5], %s2008
      %s2011 = sshll.u32 [#allocation4], 4
      %s2012 = int_to_ptr.vmem [resolvable:$true] %s2011
      %2014 = dma.vmem_to_hbm [thread:$0]  %s2012, 32, %s11, [#allocation5]
    $region49: #{classification_cnn_forward.1} parent=1 // pred_fallthru
      _
    // Predicated region
    $region50: #{classification_cnn_forward.1} parent=1 // pred_check
      _
    $region51: #{classification_cnn_forward.1} parent=1 // pred_check_branch
      %2016 = sbr.rel (0) target = $region53
    $region52: #{classification_cnn_forward.1} parent=1 // pred_region
      %2017 = dma.done [#allocation5], 32
    $region53: #{classification_cnn_forward.1} parent=1 // pred_fallthru
      _
    %2018 = vsyncpa [#allocation5], 1

</llo_original>
